<compile_context>
chip_gen: v6e
topology: v6e:2x2x1
jax: 0.10.0
libtpu: 0.0.40
codegen_flags: <defaults>
</compile_context>

<pallas_src>
import math

import jax
import jax.numpy as jnp
from jax.experimental import pallas as pl
from jax.experimental.pallas import tpu as pltpu

# ---- module-consistent shapes ----------------------------------------------
B, N, C = 2, 8, 32          # batch, sequence length, embedding dim
NUM_HEADS = 4
HEAD_DIM = C // NUM_HEADS
MLP_HIDDEN = int(C * 4.0)   # mlp_ratio = 4.0
EPS = 1e-6                  # norm_layer = partial(nn.LayerNorm, eps=1e-6)
SCALE = HEAD_DIM ** (-0.5)  # qk_scale=None -> head_dim ** -0.5
BN = B * N


def _num_row_blocks():
    """v7x has 2 TensorCores per chip -> shard whole batches across them.
    Single-TC chips (v5e / v6e / older) keep grid=(1,)."""
    try:
        kind = jax.devices()[0].device_kind.lower()
    except Exception:
        return 1
    if "v7" in kind or "7x" in kind:
        return B
    return 1


def _newton_reciprocal(d):
    # EUP approx reciprocal + one Newton step -> ~fp32-exact, divide off the VALU.
    r = pl.reciprocal(d, approx=True)
    return r * (2.0 - d * r)


def _erf(x):
    # Abramowitz & Stegun 7.1.26 rational approximation (|err| < 1.5e-7).
    a1, a2, a3, a4, a5 = 0.254829592, -0.284496736, 1.421413741, -1.453152027, 1.061405429
    p = 0.3275911
    sgn = jnp.where(x >= 0.0, 1.0, -1.0)
    ax = jnp.abs(x)
    t = _newton_reciprocal(1.0 + p * ax)
    poly = ((((a5 * t + a4) * t + a3) * t + a2) * t + a1) * t
    return sgn * (1.0 - poly * jnp.exp(-ax * ax))


def _gelu_exact(x):
    # nn.GELU() default is the exact erf formulation.
    # TODO(synk): not bit-exact vs torch erf (poly approx, |err| < 1.5e-7).
    return 0.5 * x * (1.0 + _erf(x * (1.0 / math.sqrt(2.0))))


def _layernorm(x, gamma, beta):
    mu = jnp.mean(x, axis=-1, keepdims=True)
    var = jnp.mean(jnp.square(x - mu), axis=-1, keepdims=True)
    return (x - mu) * jax.lax.rsqrt(var + EPS) * gamma + beta


def make_block_kernel(b_local):
    """Kernel for one grid step covering `b_local` whole batches (rows = b_local*N)."""
    rows = b_local * N
    bh = b_local * NUM_HEADS   # folded attention batch (head-major, then batch)

    def block_kernel(x_ref,
                     g1_ref, be1_ref,          # norm1
                     wqkv_ref,                 # attn.qkv (bf16, no bias)
                     wproj_ref, bproj_ref,     # attn.proj (W bf16, b f32)
                     g2_ref, be2_ref,          # norm2
                     w1_ref, bm1_ref,          # mlp.fc1
                     w2_ref, bm2_ref,          # mlp.fc2
                     slab_ref):                # (rows, 2C): [out | attn]
        x = x_ref[...]                                               # (rows, C) f32

        # ---- norm1 + fused QKV projection (bf16 operands, f32 accumulate) ----
        xn = _layernorm(x, g1_ref[0], be1_ref[0])
        qkv = jnp.dot(xn.astype(jnp.bfloat16), wqkv_ref[...],
                      preferred_element_type=jnp.float32)            # (rows, 3C)

        # ---- fold all heads into ONE leading attention batch (bh, N, hd) -----
        def fold(col0):
            parts = [
                qkv[:, col0 + h * HEAD_DIM: col0 + (h + 1) * HEAD_DIM]
                .reshape(1, b_local, N, HEAD_DIM)
                for h in range(NUM_HEADS)
            ]
            return jnp.concatenate(parts, axis=0).reshape(bh, N, HEAD_DIM)

        q = fold(0)
        k = fold(C)
        v = fold(2 * C)

        # ---- one batched score matmul + ONE softmax over all heads -----------
        s = jnp.einsum('bnd,bmd->bnm', q, k,
                       preferred_element_type=jnp.float32) * SCALE   # (bh, N, N)
        s = s - jnp.max(s, axis=-1, keepdims=True)
        e = jnp.exp(s)
        den = jnp.sum(e, axis=-1, keepdims=True)
        a = e * _newton_reciprocal(den)                              # rows sum to ~1

        y = jnp.einsum('bnm,bmd->bnd', a, v,
                       preferred_element_type=jnp.float32)           # (bh, N, hd)

        # ---- unfold heads back to (rows, C) / (rows, H*N) ---------------------
        y4 = y.reshape(NUM_HEADS, b_local, N, HEAD_DIM)
        y2 = jnp.concatenate([y4[h].reshape(rows, HEAD_DIM)
                              for h in range(NUM_HEADS)], axis=-1)   # (rows, C)
        a4 = a.reshape(NUM_HEADS, b_local, N, N)
        attn_slab = jnp.concatenate([a4[h].reshape(rows, N)
                                     for h in range(NUM_HEADS)], axis=-1)  # (rows, H*N)

        # ---- output projection + residual 1 -----------------------------------
        y2 = jnp.dot(y2.astype(jnp.bfloat16), wproj_ref[...],
                     preferred_element_type=jnp.float32) + bproj_ref[0]
        x1 = x + y2      # drop_path / proj_drop are identity (p = 0)

        # ---- norm2 + MLP + residual 2 ------------------------------------------
        x2n = _layernorm(x1, g2_ref[0], be2_ref[0])
        hmid = jnp.dot(x2n.astype(jnp.bfloat16), w1_ref[...],
                       preferred_element_type=jnp.float32) + bm1_ref[0]
        hmid = _gelu_exact(hmid)
        hout = jnp.dot(hmid.astype(jnp.bfloat16), w2_ref[...],
                       preferred_element_type=jnp.float32) + bm2_ref[0]
        out = x1 + hout                                               # (rows, C)

        # ---- single lane-denser output slab: [out | attn] ----------------------
        slab_ref[...] = jnp.concatenate([out, attn_slab], axis=-1)    # (rows, 2C)

    return block_kernel


def block_forward(x, params):
    (g1, be1, wqkv, wproj, bproj, g2, be2, w1, bm1, w2, bm2) = params
    x2d = x.reshape(BN, C)

    nb = _num_row_blocks()          # 1 on v5e/v6e, B on v7x (one batch per TC)
    b_local = B // nb
    rows = b_local * N

    # bf16 matmul operands (fp32 accumulation in-kernel); halves weight DMA bytes.
    wqkv_b = wqkv.astype(jnp.bfloat16)
    wproj_b = wproj.astype(jnp.bfloat16)
    w1_b = w1.astype(jnp.bfloat16)
    w2_b = w2.astype(jnp.bfloat16)

    def resident(shape):   # weight stays in the same block for every grid step
        nd = len(shape)
        return pl.BlockSpec(shape, lambda i, _nd=nd: (0,) * _nd)

    # advisory cost estimate so XLA can schedule around this tiny call
    flops = (2 * BN * C * (3 * C)                          # qkv
             + 2 * (2 * B * NUM_HEADS * N * N * HEAD_DIM)  # scores + attn@v
             + 2 * BN * C * C                              # proj
             + 2 * BN * C * MLP_HIDDEN                     # fc1
             + 2 * BN * MLP_HIDDEN * C)                    # fc2
    transcendentals = B * NUM_HEADS * N * N + BN * MLP_HIDDEN
    bytes_accessed = (4 * int(x2d.size)
                      + 2 * int(wqkv.size + wproj.size + w1.size + w2.size)   # bf16
                      + 4 * int(g1.size + be1.size + bproj.size + g2.size
                                + be2.size + bm1.size + bm2.size)
                      + 4 * BN * 2 * C)

    slab = pl.pallas_call(
        make_block_kernel(b_local),
        out_shape=jax.ShapeDtypeStruct((BN, 2 * C), jnp.float32),
        grid_spec=pltpu.PrefetchScalarGridSpec(
            num_scalar_prefetch=0,
            grid=(nb,),
            in_specs=[
                pl.BlockSpec((rows, C), lambda i: (i, 0)),        # x (rows split per TC)
                resident((1, C)), resident((1, C)),               # norm1 gamma/beta
                resident((C, 3 * C)),                             # qkv weight (bf16)
                resident((C, C)), resident((1, C)),               # proj weight/bias
                resident((1, C)), resident((1, C)),               # norm2 gamma/beta
                resident((C, MLP_HIDDEN)), resident((1, MLP_HIDDEN)),  # fc1 W/b
                resident((MLP_HIDDEN, C)), resident((1, C)),           # fc2 W/b
            ],
            out_specs=pl.BlockSpec((rows, 2 * C), lambda i: (i, 0)),
        ),
        compiler_params=pltpu.CompilerParams(
            dimension_semantics=(("parallel",) if nb > 1 else ("arbitrary",))),
        cost_estimate=pl.CostEstimate(flops=flops,
                                      transcendentals=transcendentals,
                                      bytes_accessed=bytes_accessed),
    )(x2d, g1, be1, wqkv_b, wproj_b, bproj, g2, be2, w1_b, bm1, w2_b, bm2)

    out = slab[:, :C].reshape(B, N, C)
    # slab[b*N+n, C + h*N + m] == attn[b, h, n, m]
    attn = slab[:, C:].reshape(B, N, NUM_HEADS, N).transpose(0, 2, 1, 3)
    return out, attn


# ---- pure-JAX fp32 reference (mirrors the PyTorch forward) -------------------
def reference(x, params):
    g1, be1, wqkv, wproj, bproj, g2, be2, w1, bm1, w2, bm2 = params

    def ln(z, g, b):
        mu = jnp.mean(z, -1, keepdims=True)
        var = jnp.mean((z - mu) ** 2, -1, keepdims=True)
        return (z - mu) / jnp.sqrt(var + EPS) * g + b

    xn = ln(x, g1[0], be1[0])
    qkv = (xn @ wqkv).reshape(B, N, 3, NUM_HEADS, HEAD_DIM).transpose(2, 0, 3, 1, 4)
    q, k, v = qkv[0], qkv[1], qkv[2]
    attn = jnp.einsum('bhnd,bhmd->bhnm', q, k) * SCALE
    attn = jax.nn.softmax(attn, axis=-1)
    y = jnp.einsum('bhnm,bhmd->bhnd', attn, v).transpose(0, 2, 1, 3).reshape(B, N, C)
    y = y @ wproj + bproj[0]
    x1 = x + y
    h = ln(x1, g2[0], be2[0]) @ w1 + bm1[0]
    h = jax.nn.gelu(h, approximate=False)
    h = h @ w2 + bm2[0]
    return x1 + h, attn


def init_params(key):
    ks = jax.random.split(key, 4)
    std = 0.02
    g1 = jnp.ones((1, C), jnp.float32)
    be1 = jnp.zeros((1, C), jnp.float32)
    wqkv = std * jax.random.normal(ks[0], (C, 3 * C), jnp.float32)
    wproj = std * jax.random.normal(ks[1], (C, C), jnp.float32)
    bproj = jnp.zeros((1, C), jnp.float32)
    g2 = jnp.ones((1, C), jnp.float32)
    be2 = jnp.zeros((1, C), jnp.float32)
    w1 = std * jax.random.normal(ks[2], (C, MLP_HIDDEN), jnp.float32)
    bm1 = jnp.zeros((1, MLP_HIDDEN), jnp.float32)
    w2 = std * jax.random.normal(ks[3], (MLP_HIDDEN, C), jnp.float32)
    bm2 = jnp.zeros((1, C), jnp.float32)
    return (g1, be1, wqkv, wproj, bproj, g2, be2, w1, bm1, w2, bm2)


if __name__ == "__main__":
    key = jax.random.PRNGKey(0)
    kx, kp = jax.random.split(key)
    x = jax.random.normal(kx, (B, N, C), jnp.float32)
    params = init_params(kp)

    out, attn = block_forward(x, params)
    out, attn = jax.block_until_ready(out), jax.block_until_ready(attn)

    ref_out, ref_attn = reference(x, params)
    assert out.shape == (B, N, C) and attn.shape == (B, NUM_HEADS, N, N)
    # bf16 matmul operands (f32 accumulation) + erf polynomial -> slightly looser
    # tolerance than pure fp32; Newton-refined reciprocals keep softmax ~exact.
    assert jnp.allclose(out, ref_out, atol=2e-3, rtol=2e-3)
    assert jnp.allclose(attn, ref_attn, atol=2e-3, rtol=2e-3)

    print("KERNEL_OK")
</pallas_src>

<mosaic_0001>
module attributes {stable_mosaic.version = 11 : i64} {
  func.func @block_kernel(%arg0: i32, %arg1: memref<16x32xf32, #tpu.memory_space<vmem>>, %arg2: memref<1x32xf32, #tpu.memory_space<vmem>>, %arg3: memref<1x32xf32, #tpu.memory_space<vmem>>, %arg4: memref<32x96xbf16, #tpu.memory_space<vmem>>, %arg5: memref<32x32xbf16, #tpu.memory_space<vmem>>, %arg6: memref<1x32xf32, #tpu.memory_space<vmem>>, %arg7: memref<1x32xf32, #tpu.memory_space<vmem>>, %arg8: memref<1x32xf32, #tpu.memory_space<vmem>>, %arg9: memref<32x128xbf16, #tpu.memory_space<vmem>>, %arg10: memref<1x128xf32, #tpu.memory_space<vmem>>, %arg11: memref<128x32xbf16, #tpu.memory_space<vmem>>, %arg12: memref<1x32xf32, #tpu.memory_space<vmem>>, %arg13: memref<16x64xf32, #tpu.memory_space<vmem>>) attributes {dimension_semantics = [#tpu.dimension_semantics<arbitrary>], iteration_bounds = array<i64: 1>, scalar_prefetch = 0 : i64, scratch_operands = 0 : i64, tpu.core_type = #tpu.core_type<tc>, window_params = [{transform_indices = @transform_0, window_bounds = array<i64: 16, 32>}, {pipeline_mode = #tpu.pipeline_mode<synchronous>, transform_indices = @transform_1, window_bounds = array<i64: 1, 32>}, {pipeline_mode = #tpu.pipeline_mode<synchronous>, transform_indices = @transform_2, window_bounds = array<i64: 1, 32>}, {pipeline_mode = #tpu.pipeline_mode<synchronous>, transform_indices = @transform_3, window_bounds = array<i64: 32, 96>}, {pipeline_mode = #tpu.pipeline_mode<synchronous>, transform_indices = @transform_4, window_bounds = array<i64: 32, 32>}, {pipeline_mode = #tpu.pipeline_mode<synchronous>, transform_indices = @transform_5, window_bounds = array<i64: 1, 32>}, {pipeline_mode = #tpu.pipeline_mode<synchronous>, transform_indices = @transform_6, window_bounds = array<i64: 1, 32>}, {pipeline_mode = #tpu.pipeline_mode<synchronous>, transform_indices = @transform_7, window_bounds = array<i64: 1, 32>}, {pipeline_mode = #tpu.pipeline_mode<synchronous>, transform_indices = @transform_8, window_bounds = array<i64: 32, 128>}, {pipeline_mode = #tpu.pipeline_mode<synchronous>, transform_indices = @transform_9, window_bounds = array<i64: 1, 128>}, {pipeline_mode = #tpu.pipeline_mode<synchronous>, transform_indices = @transform_10, window_bounds = array<i64: 128, 32>}, {pipeline_mode = #tpu.pipeline_mode<synchronous>, transform_indices = @transform_11, window_bounds = array<i64: 1, 32>}, {transform_indices = @transform_12, window_bounds = array<i64: 16, 64>}]} {
    %c0 = arith.constant 0 : index
    %c0_0 = arith.constant 0 : index
    %0 = vector.load %arg1[%c0, %c0_0] : memref<16x32xf32, #tpu.memory_space<vmem>>, vector<16x32xf32>
    %c0_1 = arith.constant 0 : index
    %c0_2 = arith.constant 0 : index
    %1 = vector.load %arg2[%c0_1, %c0_2] : memref<1x32xf32, #tpu.memory_space<vmem>>, vector<1x32xf32>
    %2 = vector.shape_cast %1 : vector<1x32xf32> to vector<32xf32>
    %c0_3 = arith.constant 0 : index
    %c0_4 = arith.constant 0 : index
    %3 = vector.load %arg3[%c0_3, %c0_4] : memref<1x32xf32, #tpu.memory_space<vmem>>, vector<1x32xf32>
    %4 = vector.shape_cast %3 : vector<1x32xf32> to vector<32xf32>
    %cst = arith.constant dense<0.000000e+00> : vector<16xf32>
    %5 = vector.multi_reduction <add>, %0, %cst [1] : vector<16x32xf32> to vector<16xf32>
    %6 = vector.shape_cast %5 : vector<16xf32> to vector<16x1xf32>
    %cst_5 = arith.constant 3.200000e+01 : f32
    %7 = vector.broadcast %cst_5 : f32 to vector<16x1xf32>
    %8 = arith.divf %6, %7 : vector<16x1xf32>
    %9 = vector.broadcast %8 : vector<16x1xf32> to vector<16x32xf32>
    %10 = arith.subf %0, %9 : vector<16x32xf32>
    %11 = arith.mulf %10, %10 : vector<16x32xf32>
    %cst_6 = arith.constant dense<0.000000e+00> : vector<16xf32>
    %12 = vector.multi_reduction <add>, %11, %cst_6 [1] : vector<16x32xf32> to vector<16xf32>
    %13 = vector.shape_cast %12 : vector<16xf32> to vector<16x1xf32>
    %cst_7 = arith.constant 3.200000e+01 : f32
    %14 = vector.broadcast %cst_7 : f32 to vector<16x1xf32>
    %15 = arith.divf %13, %14 : vector<16x1xf32>
    %16 = vector.broadcast %8 : vector<16x1xf32> to vector<16x32xf32>
    %17 = arith.subf %0, %16 : vector<16x32xf32>
    %cst_8 = arith.constant 9.99999997E-7 : f32
    %18 = vector.broadcast %cst_8 : f32 to vector<16x1xf32>
    %19 = arith.addf %15, %18 : vector<16x1xf32>
    %20 = math.rsqrt %19 : vector<16x1xf32>
    %21 = vector.broadcast %20 : vector<16x1xf32> to vector<16x32xf32>
    %22 = arith.mulf %17, %21 : vector<16x32xf32>
    %23 = vector.shape_cast %2 : vector<32xf32> to vector<1x32xf32>
    %24 = vector.broadcast %23 : vector<1x32xf32> to vector<16x32xf32>
    %25 = arith.mulf %22, %24 : vector<16x32xf32>
    %26 = vector.shape_cast %4 : vector<32xf32> to vector<1x32xf32>
    %27 = vector.broadcast %26 : vector<1x32xf32> to vector<16x32xf32>
    %28 = arith.addf %25, %27 : vector<16x32xf32>
    %29 = arith.truncf %28 : vector<16x32xf32> to vector<16x32xbf16>
    %c0_9 = arith.constant 0 : index
    %c0_10 = arith.constant 0 : index
    %30 = vector.load %arg4[%c0_9, %c0_10] : memref<32x96xbf16, #tpu.memory_space<vmem>>, vector<32x96xbf16>
    %cst_11 = arith.constant dense<0.000000e+00> : vector<16x96xf32>
    %31 = tpu.matmul %29, %30, %cst_11 {dimension_numbers = #tpu.dot_dimension_numbers<[1], [0], [0], [1], [0, 0, 1, 1], [], []>} : vector<16x32xbf16>, vector<32x96xbf16>, vector<16x96xf32> -> vector<16x96xf32>
    %32 = vector.extract_strided_slice %31 {offsets = [0, 0], sizes = [16, 8], strides = [1, 1]} : vector<16x96xf32> to vector<16x8xf32>
    %33 = vector.shape_cast %32 : vector<16x8xf32> to vector<1x2x8x8xf32>
    %34 = vector.extract_strided_slice %31 {offsets = [0, 8], sizes = [16, 8], strides = [1, 1]} : vector<16x96xf32> to vector<16x8xf32>
    %35 = vector.shape_cast %34 : vector<16x8xf32> to vector<1x2x8x8xf32>
    %36 = vector.extract_strided_slice %31 {offsets = [0, 16], sizes = [16, 8], strides = [1, 1]} : vector<16x96xf32> to vector<16x8xf32>
    %37 = vector.shape_cast %36 : vector<16x8xf32> to vector<1x2x8x8xf32>
    %38 = vector.extract_strided_slice %31 {offsets = [0, 24], sizes = [16, 8], strides = [1, 1]} : vector<16x96xf32> to vector<16x8xf32>
    %39 = vector.shape_cast %38 : vector<16x8xf32> to vector<1x2x8x8xf32>
    %40 = tpu.concatenate %33, %35, %37, %39 in 0 : vector<1x2x8x8xf32>, vector<1x2x8x8xf32>, vector<1x2x8x8xf32>, vector<1x2x8x8xf32> -> vector<4x2x8x8xf32>
    %41 = vector.shape_cast %40 : vector<4x2x8x8xf32> to vector<8x8x8xf32>
    %42 = vector.extract_strided_slice %31 {offsets = [0, 32], sizes = [16, 8], strides = [1, 1]} : vector<16x96xf32> to vector<16x8xf32>
    %43 = vector.shape_cast %42 : vector<16x8xf32> to vector<1x2x8x8xf32>
    %44 = vector.extract_strided_slice %31 {offsets = [0, 40], sizes = [16, 8], strides = [1, 1]} : vector<16x96xf32> to vector<16x8xf32>
    %45 = vector.shape_cast %44 : vector<16x8xf32> to vector<1x2x8x8xf32>
    %46 = vector.extract_strided_slice %31 {offsets = [0, 48], sizes = [16, 8], strides = [1, 1]} : vector<16x96xf32> to vector<16x8xf32>
    %47 = vector.shape_cast %46 : vector<16x8xf32> to vector<1x2x8x8xf32>
    %48 = vector.extract_strided_slice %31 {offsets = [0, 56], sizes = [16, 8], strides = [1, 1]} : vector<16x96xf32> to vector<16x8xf32>
    %49 = vector.shape_cast %48 : vector<16x8xf32> to vector<1x2x8x8xf32>
    %50 = tpu.concatenate %43, %45, %47, %49 in 0 : vector<1x2x8x8xf32>, vector<1x2x8x8xf32>, vector<1x2x8x8xf32>, vector<1x2x8x8xf32> -> vector<4x2x8x8xf32>
    %51 = vector.shape_cast %50 : vector<4x2x8x8xf32> to vector<8x8x8xf32>
    %52 = vector.extract_strided_slice %31 {offsets = [0, 64], sizes = [16, 8], strides = [1, 1]} : vector<16x96xf32> to vector<16x8xf32>
    %53 = vector.shape_cast %52 : vector<16x8xf32> to vector<1x2x8x8xf32>
    %54 = vector.extract_strided_slice %31 {offsets = [0, 72], sizes = [16, 8], strides = [1, 1]} : vector<16x96xf32> to vector<16x8xf32>
    %55 = vector.shape_cast %54 : vector<16x8xf32> to vector<1x2x8x8xf32>
    %56 = vector.extract_strided_slice %31 {offsets = [0, 80], sizes = [16, 8], strides = [1, 1]} : vector<16x96xf32> to vector<16x8xf32>
    %57 = vector.shape_cast %56 : vector<16x8xf32> to vector<1x2x8x8xf32>
    %58 = vector.extract_strided_slice %31 {offsets = [0, 88], sizes = [16, 8], strides = [1, 1]} : vector<16x96xf32> to vector<16x8xf32>
    %59 = vector.shape_cast %58 : vector<16x8xf32> to vector<1x2x8x8xf32>
    %60 = tpu.concatenate %53, %55, %57, %59 in 0 : vector<1x2x8x8xf32>, vector<1x2x8x8xf32>, vector<1x2x8x8xf32>, vector<1x2x8x8xf32> -> vector<4x2x8x8xf32>
    %61 = vector.shape_cast %60 : vector<4x2x8x8xf32> to vector<8x8x8xf32>
    "tpu.trace_start"() <{level = 10 : i32, message = "bnd,bmd->bnm"}> : () -> ()
    %cst_12 = arith.constant dense<0.000000e+00> : vector<8x8x8xf32>
    %62 = tpu.matmul %41, %51, %cst_12 {dimension_numbers = #tpu.dot_dimension_numbers<[2], [2], [1], [1], [0, 0, 0, 1, 1, 1], [0], [0]>} : vector<8x8x8xf32>, vector<8x8x8xf32>, vector<8x8x8xf32> -> vector<8x8x8xf32>
    "tpu.trace_stop"() : () -> ()
    %cst_13 = arith.constant 0.353553385 : f32
    %63 = vector.broadcast %cst_13 : f32 to vector<8x8x8xf32>
    %64 = arith.mulf %62, %63 : vector<8x8x8xf32>
    %cst_14 = arith.constant dense<0xFF800000> : vector<8x8xf32>
    %65 = vector.multi_reduction <maximumf>, %64, %cst_14 [2] : vector<8x8x8xf32> to vector<8x8xf32>
    %66 = vector.shape_cast %65 : vector<8x8xf32> to vector<8x8x1xf32>
    %67 = vector.broadcast %66 : vector<8x8x1xf32> to vector<8x8x8xf32>
    %68 = arith.subf %64, %67 : vector<8x8x8xf32>
    %69 = math.exp %68 : vector<8x8x8xf32>
    %cst_15 = arith.constant dense<0.000000e+00> : vector<8x8xf32>
    %70 = vector.multi_reduction <add>, %69, %cst_15 [2] : vector<8x8x8xf32> to vector<8x8xf32>
    %71 = vector.shape_cast %70 : vector<8x8xf32> to vector<8x8x1xf32>
    %72 = tpu.reciprocal %71 {approx = true} : vector<8x8x1xf32> -> vector<8x8x1xf32>
    %73 = arith.mulf %71, %72 : vector<8x8x1xf32>
    %cst_16 = arith.constant 2.000000e+00 : f32
    %74 = vector.broadcast %cst_16 : f32 to vector<8x8x1xf32>
    %75 = arith.subf %74, %73 : vector<8x8x1xf32>
    %76 = arith.mulf %72, %75 : vector<8x8x1xf32>
    %77 = vector.broadcast %76 : vector<8x8x1xf32> to vector<8x8x8xf32>
    %78 = arith.mulf %69, %77 : vector<8x8x8xf32>
    "tpu.trace_start"() <{level = 10 : i32, message = "bnm,bmd->bnd"}> : () -> ()
    %cst_17 = arith.constant dense<0.000000e+00> : vector<8x8x8xf32>
    %79 = tpu.matmul %78, %61, %cst_17 {dimension_numbers = #tpu.dot_dimension_numbers<[2], [1], [1], [2], [0, 0, 0, 1, 1, 2], [0], [0]>} : vector<8x8x8xf32>, vector<8x8x8xf32>, vector<8x8x8xf32> -> vector<8x8x8xf32>
    "tpu.trace_stop"() : () -> ()
    %80 = vector.shape_cast %79 : vector<8x8x8xf32> to vector<4x2x8x8xf32>
    %81 = vector.extract_strided_slice %80 {offsets = [0, 0, 0, 0], sizes = [1, 2, 8, 8], strides = [1, 1, 1, 1]} : vector<4x2x8x8xf32> to vector<1x2x8x8xf32>
    %82 = vector.shape_cast %81 : vector<1x2x8x8xf32> to vector<2x8x8xf32>
    %83 = vector.shape_cast %82 : vector<2x8x8xf32> to vector<16x8xf32>
    %84 = vector.extract_strided_slice %80 {offsets = [1, 0, 0, 0], sizes = [1, 2, 8, 8], strides = [1, 1, 1, 1]} : vector<4x2x8x8xf32> to vector<1x2x8x8xf32>
    %85 = vector.shape_cast %84 : vector<1x2x8x8xf32> to vector<2x8x8xf32>
    %86 = vector.shape_cast %85 : vector<2x8x8xf32> to vector<16x8xf32>
    %87 = vector.extract_strided_slice %80 {offsets = [2, 0, 0, 0], sizes = [1, 2, 8, 8], strides = [1, 1, 1, 1]} : vector<4x2x8x8xf32> to vector<1x2x8x8xf32>
    %88 = vector.shape_cast %87 : vector<1x2x8x8xf32> to vector<2x8x8xf32>
    %89 = vector.shape_cast %88 : vector<2x8x8xf32> to vector<16x8xf32>
    %90 = vector.extract_strided_slice %80 {offsets = [3, 0, 0, 0], sizes = [1, 2, 8, 8], strides = [1, 1, 1, 1]} : vector<4x2x8x8xf32> to vector<1x2x8x8xf32>
    %91 = vector.shape_cast %90 : vector<1x2x8x8xf32> to vector<2x8x8xf32>
    %92 = vector.shape_cast %91 : vector<2x8x8xf32> to vector<16x8xf32>
    %93 = tpu.concatenate %83, %86, %89, %92 in 1 : vector<16x8xf32>, vector<16x8xf32>, vector<16x8xf32>, vector<16x8xf32> -> vector<16x32xf32>
    %94 = vector.shape_cast %78 : vector<8x8x8xf32> to vector<4x2x8x8xf32>
    %95 = vector.extract_strided_slice %94 {offsets = [0, 0, 0, 0], sizes = [1, 2, 8, 8], strides = [1, 1, 1, 1]} : vector<4x2x8x8xf32> to vector<1x2x8x8xf32>
    %96 = vector.shape_cast %95 : vector<1x2x8x8xf32> to vector<2x8x8xf32>
    %97 = vector.shape_cast %96 : vector<2x8x8xf32> to vector<16x8xf32>
    %98 = vector.extract_strided_slice %94 {offsets = [1, 0, 0, 0], sizes = [1, 2, 8, 8], strides = [1, 1, 1, 1]} : vector<4x2x8x8xf32> to vector<1x2x8x8xf32>
    %99 = vector.shape_cast %98 : vector<1x2x8x8xf32> to vector<2x8x8xf32>
    %100 = vector.shape_cast %99 : vector<2x8x8xf32> to vector<16x8xf32>
    %101 = vector.extract_strided_slice %94 {offsets = [2, 0, 0, 0], sizes = [1, 2, 8, 8], strides = [1, 1, 1, 1]} : vector<4x2x8x8xf32> to vector<1x2x8x8xf32>
    %102 = vector.shape_cast %101 : vector<1x2x8x8xf32> to vector<2x8x8xf32>
    %103 = vector.shape_cast %102 : vector<2x8x8xf32> to vector<16x8xf32>
    %104 = vector.extract_strided_slice %94 {offsets = [3, 0, 0, 0], sizes = [1, 2, 8, 8], strides = [1, 1, 1, 1]} : vector<4x2x8x8xf32> to vector<1x2x8x8xf32>
    %105 = vector.shape_cast %104 : vector<1x2x8x8xf32> to vector<2x8x8xf32>
    %106 = vector.shape_cast %105 : vector<2x8x8xf32> to vector<16x8xf32>
    %107 = tpu.concatenate %97, %100, %103, %106 in 1 : vector<16x8xf32>, vector<16x8xf32>, vector<16x8xf32>, vector<16x8xf32> -> vector<16x32xf32>
    %108 = arith.truncf %93 : vector<16x32xf32> to vector<16x32xbf16>
    %c0_18 = arith.constant 0 : index
    %c0_19 = arith.constant 0 : index
    %109 = vector.load %arg5[%c0_18, %c0_19] : memref<32x32xbf16, #tpu.memory_space<vmem>>, vector<32x32xbf16>
    %cst_20 = arith.constant dense<0.000000e+00> : vector<16x32xf32>
    %110 = tpu.matmul %108, %109, %cst_20 {dimension_numbers = #tpu.dot_dimension_numbers<[1], [0], [0], [1], [0, 0, 1, 1], [], []>} : vector<16x32xbf16>, vector<32x32xbf16>, vector<16x32xf32> -> vector<16x32xf32>
    %c0_21 = arith.constant 0 : index
    %c0_22 = arith.constant 0 : index
    %111 = vector.load %arg6[%c0_21, %c0_22] : memref<1x32xf32, #tpu.memory_space<vmem>>, vector<1x32xf32>
    %112 = vector.shape_cast %111 : vector<1x32xf32> to vector<32xf32>
    %113 = vector.shape_cast %112 : vector<32xf32> to vector<1x32xf32>
    %114 = vector.broadcast %113 : vector<1x32xf32> to vector<16x32xf32>
    %115 = arith.addf %110, %114 : vector<16x32xf32>
    %116 = arith.addf %0, %115 : vector<16x32xf32>
    %c0_23 = arith.constant 0 : index
    %c0_24 = arith.constant 0 : index
    %117 = vector.load %arg7[%c0_23, %c0_24] : memref<1x32xf32, #tpu.memory_space<vmem>>, vector<1x32xf32>
    %118 = vector.shape_cast %117 : vector<1x32xf32> to vector<32xf32>
    %c0_25 = arith.constant 0 : index
    %c0_26 = arith.constant 0 : index
    %119 = vector.load %arg8[%c0_25, %c0_26] : memref<1x32xf32, #tpu.memory_space<vmem>>, vector<1x32xf32>
    %120 = vector.shape_cast %119 : vector<1x32xf32> to vector<32xf32>
    %cst_27 = arith.constant dense<0.000000e+00> : vector<16xf32>
    %121 = vector.multi_reduction <add>, %116, %cst_27 [1] : vector<16x32xf32> to vector<16xf32>
    %122 = vector.shape_cast %121 : vector<16xf32> to vector<16x1xf32>
    %cst_28 = arith.constant 3.200000e+01 : f32
    %123 = vector.broadcast %cst_28 : f32 to vector<16x1xf32>
    %124 = arith.divf %122, %123 : vector<16x1xf32>
    %125 = vector.broadcast %124 : vector<16x1xf32> to vector<16x32xf32>
    %126 = arith.subf %116, %125 : vector<16x32xf32>
    %127 = arith.mulf %126, %126 : vector<16x32xf32>
    %cst_29 = arith.constant dense<0.000000e+00> : vector<16xf32>
    %128 = vector.multi_reduction <add>, %127, %cst_29 [1] : vector<16x32xf32> to vector<16xf32>
    %129 = vector.shape_cast %128 : vector<16xf32> to vector<16x1xf32>
    %cst_30 = arith.constant 3.200000e+01 : f32
    %130 = vector.broadcast %cst_30 : f32 to vector<16x1xf32>
    %131 = arith.divf %129, %130 : vector<16x1xf32>
    %132 = vector.broadcast %124 : vector<16x1xf32> to vector<16x32xf32>
    %133 = arith.subf %116, %132 : vector<16x32xf32>
    %cst_31 = arith.constant 9.99999997E-7 : f32
    %134 = vector.broadcast %cst_31 : f32 to vector<16x1xf32>
    %135 = arith.addf %131, %134 : vector<16x1xf32>
    %136 = math.rsqrt %135 : vector<16x1xf32>
    %137 = vector.broadcast %136 : vector<16x1xf32> to vector<16x32xf32>
    %138 = arith.mulf %133, %137 : vector<16x32xf32>
    %139 = vector.shape_cast %118 : vector<32xf32> to vector<1x32xf32>
    %140 = vector.broadcast %139 : vector<1x32xf32> to vector<16x32xf32>
    %141 = arith.mulf %138, %140 : vector<16x32xf32>
    %142 = vector.shape_cast %120 : vector<32xf32> to vector<1x32xf32>
    %143 = vector.broadcast %142 : vector<1x32xf32> to vector<16x32xf32>
    %144 = arith.addf %141, %143 : vector<16x32xf32>
    %145 = arith.truncf %144 : vector<16x32xf32> to vector<16x32xbf16>
    %c0_32 = arith.constant 0 : index
    %c0_33 = arith.constant 0 : index
    %146 = vector.load %arg9[%c0_32, %c0_33] : memref<32x128xbf16, #tpu.memory_space<vmem>>, vector<32x128xbf16>
    %cst_34 = arith.constant dense<0.000000e+00> : vector<16x128xf32>
    %147 = tpu.matmul %145, %146, %cst_34 {dimension_numbers = #tpu.dot_dimension_numbers<[1], [0], [0], [1], [0, 0, 1, 1], [], []>} : vector<16x32xbf16>, vector<32x128xbf16>, vector<16x128xf32> -> vector<16x128xf32>
    %c0_35 = arith.constant 0 : index
    %c0_36 = arith.constant 0 : index
    %148 = vector.load %arg10[%c0_35, %c0_36] : memref<1x128xf32, #tpu.memory_space<vmem>>, vector<1x128xf32>
    %149 = vector.shape_cast %148 : vector<1x128xf32> to vector<128xf32>
    %150 = vector.shape_cast %149 : vector<128xf32> to vector<1x128xf32>
    %151 = vector.broadcast %150 : vector<1x128xf32> to vector<16x128xf32>
    %152 = arith.addf %147, %151 : vector<16x128xf32>
    %cst_37 = arith.constant 5.000000e-01 : f32
    %153 = vector.broadcast %cst_37 : f32 to vector<16x128xf32>
    %154 = arith.mulf %153, %152 : vector<16x128xf32>
    %cst_38 = arith.constant 0.707106769 : f32
    %155 = vector.broadcast %cst_38 : f32 to vector<16x128xf32>
    %156 = arith.mulf %152, %155 : vector<16x128xf32>
    %cst_39 = arith.constant 0.000000e+00 : f32
    %157 = vector.broadcast %cst_39 : f32 to vector<16x128xf32>
    %158 = arith.cmpf oge, %156, %157 : vector<16x128xf32>
    %cst_40 = arith.constant 1.000000e+00 : f32
    %cst_41 = arith.constant -1.000000e+00 : f32
    %159 = vector.broadcast %cst_40 : f32 to vector<16x128xf32>
    %160 = vector.broadcast %cst_41 : f32 to vector<16x128xf32>
    %161 = arith.select %158, %159, %160 : vector<16x128xi1>, vector<16x128xf32>
    %162 = math.absf %156 : vector<16x128xf32>
    %cst_42 = arith.constant 0.327591091 : f32
    %163 = vector.broadcast %cst_42 : f32 to vector<16x128xf32>
    %164 = arith.mulf %163, %162 : vector<16x128xf32>
    %cst_43 = arith.constant 1.000000e+00 : f32
    %165 = vector.broadcast %cst_43 : f32 to vector<16x128xf32>
    %166 = arith.addf %165, %164 : vector<16x128xf32>
    %167 = tpu.reciprocal %166 {approx = true} : vector<16x128xf32> -> vector<16x128xf32>
    %168 = arith.mulf %166, %167 : vector<16x128xf32>
    %cst_44 = arith.constant 2.000000e+00 : f32
    %169 = vector.broadcast %cst_44 : f32 to vector<16x128xf32>
    %170 = arith.subf %169, %168 : vector<16x128xf32>
    %171 = arith.mulf %167, %170 : vector<16x128xf32>
    %cst_45 = arith.constant 1.06140542 : f32
    %172 = vector.broadcast %cst_45 : f32 to vector<16x128xf32>
    %173 = arith.mulf %172, %171 : vector<16x128xf32>
    %cst_46 = arith.constant -1.45315206 : f32
    %174 = vector.broadcast %cst_46 : f32 to vector<16x128xf32>
    %175 = arith.addf %173, %174 : vector<16x128xf32>
    %176 = arith.mulf %175, %171 : vector<16x128xf32>
    %cst_47 = arith.constant 1.42141378 : f32
    %177 = vector.broadcast %cst_47 : f32 to vector<16x128xf32>
    %178 = arith.addf %176, %177 : vector<16x128xf32>
    %179 = arith.mulf %178, %171 : vector<16x128xf32>
    %cst_48 = arith.constant -0.284496725 : f32
    %180 = vector.broadcast %cst_48 : f32 to vector<16x128xf32>
    %181 = arith.addf %179, %180 : vector<16x128xf32>
    %182 = arith.mulf %181, %171 : vector<16x128xf32>
    %cst_49 = arith.constant 0.254829586 : f32
    %183 = vector.broadcast %cst_49 : f32 to vector<16x128xf32>
    %184 = arith.addf %182, %183 : vector<16x128xf32>
    %185 = arith.mulf %184, %171 : vector<16x128xf32>
    %cst_50 = arith.constant 0.000000e+00 : f32
    %186 = vector.broadcast %cst_50 : f32 to vector<16x128xf32>
    %187 = arith.subf %186, %162 : vector<16x128xf32>
    %188 = arith.mulf %187, %162 : vector<16x128xf32>
    %189 = math.exp %188 : vector<16x128xf32>
    %190 = arith.mulf %185, %189 : vector<16x128xf32>
    %cst_51 = arith.constant 1.000000e+00 : f32
    %191 = vector.broadcast %cst_51 : f32 to vector<16x128xf32>
    %192 = arith.subf %191, %190 : vector<16x128xf32>
    %193 = arith.mulf %161, %192 : vector<16x128xf32>
    %cst_52 = arith.constant 1.000000e+00 : f32
    %194 = vector.broadcast %cst_52 : f32 to vector<16x128xf32>
    %195 = arith.addf %194, %193 : vector<16x128xf32>
    %196 = arith.mulf %154, %195 : vector<16x128xf32>
    %197 = arith.truncf %196 : vector<16x128xf32> to vector<16x128xbf16>
    %c0_53 = arith.constant 0 : index
    %c0_54 = arith.constant 0 : index
    %198 = vector.load %arg11[%c0_53, %c0_54] : memref<128x32xbf16, #tpu.memory_space<vmem>>, vector<128x32xbf16>
    %cst_55 = arith.constant dense<0.000000e+00> : vector<16x32xf32>
    %199 = tpu.matmul %197, %198, %cst_55 {dimension_numbers = #tpu.dot_dimension_numbers<[1], [0], [0], [1], [0, 0, 1, 1], [], []>} : vector<16x128xbf16>, vector<128x32xbf16>, vector<16x32xf32> -> vector<16x32xf32>
    %c0_56 = arith.constant 0 : index
    %c0_57 = arith.constant 0 : index
    %200 = vector.load %arg12[%c0_56, %c0_57] : memref<1x32xf32, #tpu.memory_space<vmem>>, vector<1x32xf32>
    %201 = vector.shape_cast %200 : vector<1x32xf32> to vector<32xf32>
    %202 = vector.shape_cast %201 : vector<32xf32> to vector<1x32xf32>
    %203 = vector.broadcast %202 : vector<1x32xf32> to vector<16x32xf32>
    %204 = arith.addf %199, %203 : vector<16x32xf32>
    %205 = arith.addf %116, %204 : vector<16x32xf32>
    %206 = tpu.concatenate %205, %107 in 1 : vector<16x32xf32>, vector<16x32xf32> -> vector<16x64xf32>
    %c0_58 = arith.constant 0 : index
    %c0_59 = arith.constant 0 : index
    %207 = vector.load %arg13[%c0_58, %c0_59] : memref<16x64xf32, #tpu.memory_space<vmem>>, vector<16x64xf32>
    tpu.vector_store %arg13[%c0_58, %c0_59], %206 {strides = array<i32>} : memref<16x64xf32, #tpu.memory_space<vmem>>, vector<16x64xf32>,
    return
  }
  func.func @transform_0(%arg0: i32) -> (i32, i32) {
    %c0_i32 = arith.constant 0 : i32
    %c0_i32_0 = arith.constant 0 : i32
    return %arg0, %c0_i32 : i32, i32
  }
  func.func @transform_1(%arg0: i32) -> (i32, i32) {
    %c0_i32 = arith.constant 0 : i32
    %c0_i32_0 = arith.constant 0 : i32
    %c0_i32_1 = arith.constant 0 : i32
    return %c0_i32, %c0_i32_0 : i32, i32
  }
  func.func @transform_2(%arg0: i32) -> (i32, i32) {
    %c0_i32 = arith.constant 0 : i32
    %c0_i32_0 = arith.constant 0 : i32
    %c0_i32_1 = arith.constant 0 : i32
    return %c0_i32, %c0_i32_0 : i32, i32
  }
  func.func @transform_3(%arg0: i32) -> (i32, i32) {
    %c0_i32 = arith.constant 0 : i32
    %c0_i32_0 = arith.constant 0 : i32
    %c0_i32_1 = arith.constant 0 : i32
    return %c0_i32, %c0_i32_0 : i32, i32
  }
  func.func @transform_4(%arg0: i32) -> (i32, i32) {
    %c0_i32 = arith.constant 0 : i32
    %c0_i32_0 = arith.constant 0 : i32
    %c0_i32_1 = arith.constant 0 : i32
    return %c0_i32, %c0_i32_0 : i32, i32
  }
  func.func @transform_5(%arg0: i32) -> (i32, i32) {
    %c0_i32 = arith.constant 0 : i32
    %c0_i32_0 = arith.constant 0 : i32
    %c0_i32_1 = arith.constant 0 : i32
    return %c0_i32, %c0_i32_0 : i32, i32
  }
  func.func @transform_6(%arg0: i32) -> (i32, i32) {
    %c0_i32 = arith.constant 0 : i32
    %c0_i32_0 = arith.constant 0 : i32
    %c0_i32_1 = arith.constant 0 : i32
    return %c0_i32, %c0_i32_0 : i32, i32
  }
  func.func @transform_7(%arg0: i32) -> (i32, i32) {
    %c0_i32 = arith.constant 0 : i32
    %c0_i32_0 = arith.constant 0 : i32
    %c0_i32_1 = arith.constant 0 : i32
    return %c0_i32, %c0_i32_0 : i32, i32
  }
  func.func @transform_8(%arg0: i32) -> (i32, i32) {
    %c0_i32 = arith.constant 0 : i32
    %c0_i32_0 = arith.constant 0 : i32
    %c0_i32_1 = arith.constant 0 : i32
    return %c0_i32, %c0_i32_0 : i32, i32
  }
  func.func @transform_9(%arg0: i32) -> (i32, i32) {
    %c0_i32 = arith.constant 0 : i32
    %c0_i32_0 = arith.constant 0 : i32
    %c0_i32_1 = arith.constant 0 : i32
    return %c0_i32, %c0_i32_0 : i32, i32
  }
  func.func @transform_10(%arg0: i32) -> (i32, i32) {
    %c0_i32 = arith.constant 0 : i32
    %c0_i32_0 = arith.constant 0 : i32
    %c0_i32_1 = arith.constant 0 : i32
    return %c0_i32, %c0_i32_0 : i32, i32
  }
  func.func @transform_11(%arg0: i32) -> (i32, i32) {
    %c0_i32 = arith.constant 0 : i32
    %c0_i32_0 = arith.constant 0 : i32
    %c0_i32_1 = arith.constant 0 : i32
    return %c0_i32, %c0_i32_0 : i32, i32
  }
  func.func @transform_12(%arg0: i32) -> (i32, i32) {
    %c0_i32 = arith.constant 0 : i32
    %c0_i32_0 = arith.constant 0 : i32
    return %arg0, %c0_i32 : i32, i32
  }
}

</mosaic_0001>

<llo_original>
// kernel: tpu_custom_call.1
$region0: #{tpu_custom_call.1}
  #allocation0 [shape = 'u32[]', space=smem, size = 0x4, offset = 0x4, fixed_abs, tag = 'smem constant byte address 0x4 - core index']
  #allocation1 [shape = 'u32[144,128]{1,0:T(1,128)}', space=vmem, size = 0x12000, scoped, tag = 'internal scratch']
  %s0 = inlined_call_operand.vmem [shape: f32[16,32], index: 0, kind: input, shape index: {}]
  %s1 = inlined_call_operand.vmem [shape: f32[1,32], index: 1, kind: input, shape index: {}]
  %s2 = inlined_call_operand.vmem [shape: f32[1,32], index: 2, kind: input, shape index: {}]
  %s3 = inlined_call_operand.vmem [shape: bf16[32,96], index: 3, kind: input, shape index: {}]
  %s4 = inlined_call_operand.vmem [shape: bf16[32,32], index: 4, kind: input, shape index: {}]
  %s5 = inlined_call_operand.vmem [shape: f32[1,32], index: 5, kind: input, shape index: {}]
  %s6 = inlined_call_operand.vmem [shape: f32[1,32], index: 6, kind: input, shape index: {}]
  %s7 = inlined_call_operand.vmem [shape: f32[1,32], index: 7, kind: input, shape index: {}]
  %s8 = inlined_call_operand.vmem [shape: bf16[32,128], index: 8, kind: input, shape index: {}]
  %s9 = inlined_call_operand.vmem [shape: f32[1,128], index: 9, kind: input, shape index: {}]
  %s10 = inlined_call_operand.vmem [shape: bf16[128,32], index: 10, kind: input, shape index: {}]
  %s11 = inlined_call_operand.vmem [shape: f32[1,32], index: 11, kind: input, shape index: {}]
  %s12 = inlined_call_operand.hbm [shape: f32[16,64], index: 12, kind: output, shape index: {}]
  %s13 = sld [smem:[#allocation0]]
  $region58: #{tpu_custom_call.1} parent=0
    _
  %s15 = ssub.s32 1, %s13
  %s16 = scalar_select 0, %s15, %s13
  $region1: #{tpu_custom_call.1} parent=0
    #allocation2 [shape = 'u8[8192]{0}', space=vmem, size = 0x2000, scoped, tag = 'output window, operand 0, single buffered']
    #allocation3 [shape = 's32[1]{0}', space=sflag, size = 0x4, scoped, tag = 'scoped memory for tpu_custom_call.1']
    %17 = vsyncpa [#allocation3], 0
    // Predicated region
    $region2: #{tpu_custom_call.1} parent=1 // pred_check
      _
    $region3: #{tpu_custom_call.1} parent=1 // pred_check_branch
      %19 = sbr.rel (0) target = $region5
    $region4: #{tpu_custom_call.1} parent=1 // pred_region
      _
    $region5: #{tpu_custom_call.1} parent=1 // pred_fallthru
      _
    // Predicated region
    $region6: #{tpu_custom_call.1} parent=1 // pred_check
      _
    $region7: #{tpu_custom_call.1} parent=1 // pred_check_branch
      %21 = sbr.rel (0) target = $region9
    $region8: #{tpu_custom_call.1} parent=1 // pred_region
      _
    $region9: #{tpu_custom_call.1} parent=1 // pred_fallthru
      _
    // Predicated region
    $region10: #{tpu_custom_call.1} parent=1 // pred_check
      _
    $region11: #{tpu_custom_call.1} parent=1 // pred_check_branch
      %23 = sbr.rel (0) target = $region13
    $region12: #{tpu_custom_call.1} parent=1 // pred_region
      _
    $region13: #{tpu_custom_call.1} parent=1 // pred_fallthru
      _
    // Predicated region
    $region14: #{tpu_custom_call.1} parent=1 // pred_check
      _
    $region15: #{tpu_custom_call.1} parent=1 // pred_check_branch
      %25 = sbr.rel (0) target = $region17
    $region16: #{tpu_custom_call.1} parent=1 // pred_region
      _
    $region17: #{tpu_custom_call.1} parent=1 // pred_fallthru
      _
    // Predicated region
    $region18: #{tpu_custom_call.1} parent=1 // pred_check
      _
    $region19: #{tpu_custom_call.1} parent=1 // pred_check_branch
      %27 = sbr.rel (0) target = $region21
    $region20: #{tpu_custom_call.1} parent=1 // pred_region
      _
    $region21: #{tpu_custom_call.1} parent=1 // pred_fallthru
      _
    // Predicated region
    $region22: #{tpu_custom_call.1} parent=1 // pred_check
      _
    $region23: #{tpu_custom_call.1} parent=1 // pred_check_branch
      %29 = sbr.rel (0) target = $region25
    $region24: #{tpu_custom_call.1} parent=1 // pred_region
      _
    $region25: #{tpu_custom_call.1} parent=1 // pred_fallthru
      _
    // Predicated region
    $region26: #{tpu_custom_call.1} parent=1 // pred_check
      _
    $region27: #{tpu_custom_call.1} parent=1 // pred_check_branch
      %31 = sbr.rel (0) target = $region29
    $region28: #{tpu_custom_call.1} parent=1 // pred_region
      _
    $region29: #{tpu_custom_call.1} parent=1 // pred_fallthru
      _
    // Predicated region
    $region30: #{tpu_custom_call.1} parent=1 // pred_check
      _
    $region31: #{tpu_custom_call.1} parent=1 // pred_check_branch
      %33 = sbr.rel (0) target = $region33
    $region32: #{tpu_custom_call.1} parent=1 // pred_region
      _
    $region33: #{tpu_custom_call.1} parent=1 // pred_fallthru
      _
    // Predicated region
    $region34: #{tpu_custom_call.1} parent=1 // pred_check
      _
    $region35: #{tpu_custom_call.1} parent=1 // pred_check_branch
      %35 = sbr.rel (0) target = $region37
    $region36: #{tpu_custom_call.1} parent=1 // pred_region
      _
    $region37: #{tpu_custom_call.1} parent=1 // pred_fallthru
      _
    // Predicated region
    $region38: #{tpu_custom_call.1} parent=1 // pred_check
      _
    $region39: #{tpu_custom_call.1} parent=1 // pred_check_branch
      %37 = sbr.rel (0) target = $region41
    $region40: #{tpu_custom_call.1} parent=1 // pred_region
      _
    $region41: #{tpu_custom_call.1} parent=1 // pred_fallthru
      _
    // Predicated region
    $region42: #{tpu_custom_call.1} parent=1 // pred_check
      _
    $region43: #{tpu_custom_call.1} parent=1 // pred_check_branch
      %39 = sbr.rel (0) target = $region45
    $region44: #{tpu_custom_call.1} parent=1 // pred_region
      _
    $region45: #{tpu_custom_call.1} parent=1 // pred_fallthru
      _
    // Predicated region
    $region46: #{tpu_custom_call.1} parent=1 // pred_check
      _
    $region47: #{tpu_custom_call.1} parent=1 // pred_check_branch
      %41 = sbr.rel (0) target = $region49
    $region48: #{tpu_custom_call.1} parent=1 // pred_region
      _
    $region49: #{tpu_custom_call.1} parent=1 // pred_fallthru
      _
    %v43 = vld [vmem:[%s0] sm:$0xff]
    %v44 = vld [vmem:[%s0 + $0x8] sm:$0xff]
    %v45 = vld [vmem:[%s1] sm:$0x1]
    %v46 = vld [vmem:[%s2] sm:$0x1]
    %vm47 = vcmask 261120
    %v48 = vsel %vm47, %v43, 0.0
    %49 = vadd.xlane.f32.xlu0 %v48
    %v50 = vpop.xlane.xlu0 %49
    %v51 = vsel %vm47, %v44, 0.0
    %52 = vadd.xlane.f32.xlu0 %v51
    %v53 = vpop.xlane.xlu0 %52
    %v54 = vrcp.pop 32.0
    %v55 = vmul.f32 %v50, %v54
    %v56 = vmul.f32 %v53, %v54
    %v57 = vsub.f32 %v43, %v55
    %v58 = vsub.f32 %v44, %v56
    %v59 = vmul.f32 %v57, %v57
    %v60 = vmul.f32 %v58, %v58
    %v61 = vsel %vm47, %v59, 0.0
    %62 = vadd.xlane.f32.xlu0 %v61
    %v63 = vpop.xlane.xlu0 %62
    %v64 = vsel %vm47, %v60, 0.0
    %65 = vadd.xlane.f32.xlu0 %v64
    %v66 = vpop.xlane.xlu0 %65
    %v67 = vmul.f32 %v63, %v54
    %v68 = vmul.f32 %v66, %v54
    %v69 = vadd.f32 %v67, 1e-06
    %v70 = vadd.f32 %v68, 1e-06
    %v71 = vrsqrt.pop %v69
    %v72 = vrsqrt.pop %v70
    %v73 = vmul.f32 %v57, %v71
    %v74 = vmul.f32 %v58, %v72
    %v76 = vlaneseq
    %v77 = vshrl.u32 %v76, 7
    %v78 = vsub.s32 0, %v77
    %v79 = vrot.slane %v45, %v78
    %v81 = vmul.f32 %v73, %v79
    %v82 = vmul.f32 %v74, %v79
    %v84 = vlaneseq
    %v85 = vshrl.u32 %v84, 7
    %v86 = vsub.s32 0, %v85
    %v87 = vrot.slane %v46, %v86
    %v89 = vadd.f32 %v81, %v87
    %v90 = vadd.f32 %v82, %v87
    %v91 = vpack.c.bf16 %v90, %v89
    %v92 = vld [vmem:[%s3] sm:$0xf]
    %v93 = vld [vmem:[%s3 + $0x4] sm:$0xf]
    %v94 = vld [vmem:[%s3 + $0x8] sm:$0xf]
    %v95 = vld [vmem:[%s3 + $0xc] sm:$0xf]
    %v100 = vunpack.c.l.b16 %v92
    %v101 = vunpack.c.l.b16 %v93
    %v102 = vunpack.c.l.b16 %v94
    %v103 = vunpack.c.l.b16 %v95
    %v104 = vpack.c.b16 %v101, %v100
    %v105 = vpack.c.b16 %v103, %v102
    %v109 = vsel %vm47, %v91, 0
    %111 = vmatprep.subr.bf16.mxu0 0
    %112 = vmatpush1.bf16.msra.mxu0 0
    %113 = vmatprep.subr.bf16.mxu0 0
    %114 = vmatpush1.bf16.msra.mxu0 0
    %115 = vmatprep.subr.bf16.mxu0 0
    %116 = vmatpush1.bf16.msra.mxu0 0
    %117 = vmatprep.subr.bf16.mxu0 0
    %118 = vmatpush1.bf16.msra.mxu0 0
    %119 = vmatprep.subr.bf16.mxu0 0
    %120 = vmatpush1.bf16.msra.mxu0 0
    %121 = vmatprep.subr.bf16.mxu0 0
    %122 = vmatpush1.bf16.msra.mxu0 0
    %123 = vmatprep.subr.bf16.mxu0 0
    %124 = vmatpush1.bf16.msra.mxu0 %v105
    %125 = vmatprep.subr.bf16.mxu0 0
    %126 = vmatpush1.bf16.msra.mxu0 %v104
    %127 = vmatprep.subr.bf16.mxu0 0
    %128 = vmatpush2.bf16.msra.mxu0 0
    %129 = vmatprep.subr.bf16.mxu0 0
    %130 = vmatpush2.bf16.msra.mxu0 0
    %131 = vmatprep.subr.bf16.mxu0 0
    %132 = vmatpush2.bf16.msra.mxu0 0
    %133 = vmatprep.subr.bf16.mxu0 0
    %134 = vmatpush2.bf16.msra.mxu0 0
    %135 = vmatprep.subr.bf16.mxu0 0
    %136 = vmatpush2.bf16.msra.mxu0 0
    %137 = vmatprep.subr.bf16.mxu0 0
    %138 = vmatpush2.bf16.msra.mxu0 0
    %139 = vmatprep.subr.bf16.mxu0 0
    %140 = vmatpush2.bf16.msra.mxu0 0
    %141 = vmatprep.subr.bf16.mxu0 0
    %142 = vmatpush2.bf16.msra.mxu0 0
    %143 = vmatprep.mubr.bf16.mxu0 0
    %144 = vmatmul.mubr.bf16.gmra.mxu0 %v109
    %v145 = vpop.f32.mrf.mxu0
    %v146 = vadd.f32 0.0, %v145
    %v147 = vpop.f32.mrf.mxu0
    %v148 = vpop.f32.mrf.mxu0
    %v149 = vadd.f32 0.0, %v148
    %v150 = vpop.f32.mrf.mxu0
    %151 = vdwg.mxu0
    %154 = vrot.lane.b32.xlu0 %v146, 120
    %v155 = vpop.permute.xlu0 %154
    %156 = vrot.lane.b32.xlu0 %v149, 120
    %v157 = vpop.permute.xlu0 %156
    %158 = vrot.lane.b32.xlu0 %v146, 112
    %v159 = vpop.permute.xlu0 %158
    %160 = vrot.lane.b32.xlu0 %v149, 112
    %v161 = vpop.permute.xlu0 %160
    %162 = vrot.lane.b32.xlu0 %v146, 104
    %v163 = vpop.permute.xlu0 %162
    %164 = vrot.lane.b32.xlu0 %v149, 104
    %v165 = vpop.permute.xlu0 %164
    %166 = vrot.lane.b32.xlu0 %v146, 96
    %v167 = vpop.permute.xlu0 %166
    %vm168 = vcmask 64512
    %v169 = vsel %vm168, %v146, 0
    %v171 = vsel %vm168, %v167, 0
    %173 = vmatprep.subr.mxu0 0.0
    %174 = vmatpush1.xpose.msra.mxu0 0.0
    %175 = vmatprep.subr.mxu0 0.0
    %176 = vmatpush1.xpose.msra.mxu0 0.0
    %177 = vmatprep.subr.mxu0 0.0
    %178 = vmatpush1.xpose.msra.mxu0 0.0
    %179 = vmatprep.subr.mxu0 0.0
    %180 = vmatpush1.xpose.msra.mxu0 0.0
    %181 = vmatprep.subr.mxu0 0.0
    %182 = vmatpush1.xpose.msra.mxu0 0.0
    %183 = vmatprep.subr.mxu0 0.0
    %184 = vmatpush1.xpose.msra.mxu0 0.0
    %185 = vmatprep.subr.mxu0 0.0
    %186 = vmatpush1.xpose.msra.mxu0 0.0
    %187 = vmatprep.subr.mxu0 0.0
    %188 = vmatpush1.xpose.msra.mxu0 0.0
    %189 = vmatprep.subr.mxu0 0.0
    %190 = vmatpush1.xpose.msra.mxu0 0.0
    %191 = vmatprep.subr.mxu0 0.0
    %192 = vmatpush1.xpose.msra.mxu0 0.0
    %193 = vmatprep.subr.mxu0 0.0
    %194 = vmatpush1.xpose.msra.mxu0 0.0
    %195 = vmatprep.subr.mxu0 0.0
    %196 = vmatpush1.xpose.msra.mxu0 0.0
    %197 = vmatprep.subr.mxu0 0.0
    %198 = vmatpush1.xpose.msra.mxu0 0.0
    %199 = vmatprep.subr.mxu0 0.0
    %200 = vmatpush1.xpose.msra.mxu0 0.0
    %201 = vmatprep.subr.mxu0 0.0
    %202 = vmatpush1.xpose.msra.mxu0 0.0
    %203 = vmatprep.subr.mxu0 0.0
    %204 = vmatpush1.xpose.msra.mxu0 %v171
    %205 = vmatprep.subr.mxu0 0.0
    %206 = vmatpush2.xpose.msra.mxu0 0.0
    %207 = vmatprep.subr.mxu0 0.0
    %208 = vmatpush2.xpose.msra.mxu0 0.0
    %209 = vmatprep.subr.mxu0 0.0
    %210 = vmatpush2.xpose.msra.mxu0 0.0
    %211 = vmatprep.subr.mxu0 0.0
    %212 = vmatpush2.xpose.msra.mxu0 0.0
    %213 = vmatprep.subr.mxu0 0.0
    %214 = vmatpush2.xpose.msra.mxu0 0.0
    %215 = vmatprep.subr.mxu0 0.0
    %216 = vmatpush2.xpose.msra.mxu0 0.0
    %217 = vmatprep.subr.mxu0 0.0
    %218 = vmatpush2.xpose.msra.mxu0 0.0
    %219 = vmatprep.subr.mxu0 0.0
    %220 = vmatpush2.xpose.msra.mxu0 0.0
    %221 = vmatprep.subr.mxu0 0.0
    %222 = vmatpush2.xpose.msra.mxu0 0.0
    %223 = vmatprep.subr.mxu0 0.0
    %224 = vmatpush2.xpose.msra.mxu0 0.0
    %225 = vmatprep.subr.mxu0 0.0
    %226 = vmatpush2.xpose.msra.mxu0 0.0
    %227 = vmatprep.subr.mxu0 0.0
    %228 = vmatpush2.xpose.msra.mxu0 0.0
    %229 = vmatprep.subr.mxu0 0.0
    %230 = vmatpush2.xpose.msra.mxu0 0.0
    %231 = vmatprep.subr.mxu0 0.0
    %232 = vmatpush2.xpose.msra.mxu0 0.0
    %233 = vmatprep.subr.mxu0 0.0
    %234 = vmatpush2.xpose.msra.mxu0 0.0
    %235 = vmatprep.subr.mxu0 0.0
    %236 = vmatpush2.xpose.msra.mxu0 0.0
    %237 = vmatprep.mubr.f32.mxu0 0.0
    %238 = vmatmul.mubr.f32.gmra.mxu0 %v169
    %v239 = vpop.f32.mrf.mxu0
    %v240 = vadd.f32 0.0, %v239
    %v241 = vpop.f32.mrf.mxu0
    %242 = vdwg.mxu0
    %243 = vrot.lane.b32.xlu0 %v149, 96
    %v244 = vpop.permute.xlu0 %243
    %v245 = vsel %vm168, %v149, 0
    %v247 = vsel %vm168, %v244, 0
    %249 = vmatprep.subr.mxu0 0.0
    %250 = vmatpush1.xpose.msra.mxu0 0.0
    %251 = vmatprep.subr.mxu0 0.0
    %252 = vmatpush1.xpose.msra.mxu0 0.0
    %253 = vmatprep.subr.mxu0 0.0
    %254 = vmatpush1.xpose.msra.mxu0 0.0
    %255 = vmatprep.subr.mxu0 0.0
    %256 = vmatpush1.xpose.msra.mxu0 0.0
    %257 = vmatprep.subr.mxu0 0.0
    %258 = vmatpush1.xpose.msra.mxu0 0.0
    %259 = vmatprep.subr.mxu0 0.0
    %260 = vmatpush1.xpose.msra.mxu0 0.0
    %261 = vmatprep.subr.mxu0 0.0
    %262 = vmatpush1.xpose.msra.mxu0 0.0
    %263 = vmatprep.subr.mxu0 0.0
    %264 = vmatpush1.xpose.msra.mxu0 0.0
    %265 = vmatprep.subr.mxu0 0.0
    %266 = vmatpush1.xpose.msra.mxu0 0.0
    %267 = vmatprep.subr.mxu0 0.0
    %268 = vmatpush1.xpose.msra.mxu0 0.0
    %269 = vmatprep.subr.mxu0 0.0
    %270 = vmatpush1.xpose.msra.mxu0 0.0
    %271 = vmatprep.subr.mxu0 0.0
    %272 = vmatpush1.xpose.msra.mxu0 0.0
    %273 = vmatprep.subr.mxu0 0.0
    %274 = vmatpush1.xpose.msra.mxu0 0.0
    %275 = vmatprep.subr.mxu0 0.0
    %276 = vmatpush1.xpose.msra.mxu0 0.0
    %277 = vmatprep.subr.mxu0 0.0
    %278 = vmatpush1.xpose.msra.mxu0 0.0
    %279 = vmatprep.subr.mxu0 0.0
    %280 = vmatpush1.xpose.msra.mxu0 %v247
    %281 = vmatprep.subr.mxu0 0.0
    %282 = vmatpush2.xpose.msra.mxu0 0.0
    %283 = vmatprep.subr.mxu0 0.0
    %284 = vmatpush2.xpose.msra.mxu0 0.0
    %285 = vmatprep.subr.mxu0 0.0
    %286 = vmatpush2.xpose.msra.mxu0 0.0
    %287 = vmatprep.subr.mxu0 0.0
    %288 = vmatpush2.xpose.msra.mxu0 0.0
    %289 = vmatprep.subr.mxu0 0.0
    %290 = vmatpush2.xpose.msra.mxu0 0.0
    %291 = vmatprep.subr.mxu0 0.0
    %292 = vmatpush2.xpose.msra.mxu0 0.0
    %293 = vmatprep.subr.mxu0 0.0
    %294 = vmatpush2.xpose.msra.mxu0 0.0
    %295 = vmatprep.subr.mxu0 0.0
    %296 = vmatpush2.xpose.msra.mxu0 0.0
    %297 = vmatprep.subr.mxu0 0.0
    %298 = vmatpush2.xpose.msra.mxu0 0.0
    %299 = vmatprep.subr.mxu0 0.0
    %300 = vmatpush2.xpose.msra.mxu0 0.0
    %301 = vmatprep.subr.mxu0 0.0
    %302 = vmatpush2.xpose.msra.mxu0 0.0
    %303 = vmatprep.subr.mxu0 0.0
    %304 = vmatpush2.xpose.msra.mxu0 0.0
    %305 = vmatprep.subr.mxu0 0.0
    %306 = vmatpush2.xpose.msra.mxu0 0.0
    %307 = vmatprep.subr.mxu0 0.0
    %308 = vmatpush2.xpose.msra.mxu0 0.0
    %309 = vmatprep.subr.mxu0 0.0
    %310 = vmatpush2.xpose.msra.mxu0 0.0
    %311 = vmatprep.subr.mxu0 0.0
    %312 = vmatpush2.xpose.msra.mxu0 0.0
    %313 = vmatprep.mubr.f32.mxu0 0.0
    %314 = vmatmul.mubr.f32.gmra.mxu0 %v245
    %v315 = vpop.f32.mrf.mxu0
    %v316 = vadd.f32 0.0, %v315
    %v317 = vpop.f32.mrf.mxu0
    %318 = vdwg.mxu0
    %319 = vrot.lane.b32.xlu0 %v155, 96
    %v320 = vpop.permute.xlu0 %319
    %v321 = vsel %vm168, %v155, 0
    %v323 = vsel %vm168, %v320, 0
    %325 = vmatprep.subr.mxu0 0.0
    %326 = vmatpush1.xpose.msra.mxu0 0.0
    %327 = vmatprep.subr.mxu0 0.0
    %328 = vmatpush1.xpose.msra.mxu0 0.0
    %329 = vmatprep.subr.mxu0 0.0
    %330 = vmatpush1.xpose.msra.mxu0 0.0
    %331 = vmatprep.subr.mxu0 0.0
    %332 = vmatpush1.xpose.msra.mxu0 0.0
    %333 = vmatprep.subr.mxu0 0.0
    %334 = vmatpush1.xpose.msra.mxu0 0.0
    %335 = vmatprep.subr.mxu0 0.0
    %336 = vmatpush1.xpose.msra.mxu0 0.0
    %337 = vmatprep.subr.mxu0 0.0
    %338 = vmatpush1.xpose.msra.mxu0 0.0
    %339 = vmatprep.subr.mxu0 0.0
    %340 = vmatpush1.xpose.msra.mxu0 0.0
    %341 = vmatprep.subr.mxu0 0.0
    %342 = vmatpush1.xpose.msra.mxu0 0.0
    %343 = vmatprep.subr.mxu0 0.0
    %344 = vmatpush1.xpose.msra.mxu0 0.0
    %345 = vmatprep.subr.mxu0 0.0
    %346 = vmatpush1.xpose.msra.mxu0 0.0
    %347 = vmatprep.subr.mxu0 0.0
    %348 = vmatpush1.xpose.msra.mxu0 0.0
    %349 = vmatprep.subr.mxu0 0.0
    %350 = vmatpush1.xpose.msra.mxu0 0.0
    %351 = vmatprep.subr.mxu0 0.0
    %352 = vmatpush1.xpose.msra.mxu0 0.0
    %353 = vmatprep.subr.mxu0 0.0
    %354 = vmatpush1.xpose.msra.mxu0 0.0
    %355 = vmatprep.subr.mxu0 0.0
    %356 = vmatpush1.xpose.msra.mxu0 %v323
    %357 = vmatprep.subr.mxu0 0.0
    %358 = vmatpush2.xpose.msra.mxu0 0.0
    %359 = vmatprep.subr.mxu0 0.0
    %360 = vmatpush2.xpose.msra.mxu0 0.0
    %361 = vmatprep.subr.mxu0 0.0
    %362 = vmatpush2.xpose.msra.mxu0 0.0
    %363 = vmatprep.subr.mxu0 0.0
    %364 = vmatpush2.xpose.msra.mxu0 0.0
    %365 = vmatprep.subr.mxu0 0.0
    %366 = vmatpush2.xpose.msra.mxu0 0.0
    %367 = vmatprep.subr.mxu0 0.0
    %368 = vmatpush2.xpose.msra.mxu0 0.0
    %369 = vmatprep.subr.mxu0 0.0
    %370 = vmatpush2.xpose.msra.mxu0 0.0
    %371 = vmatprep.subr.mxu0 0.0
    %372 = vmatpush2.xpose.msra.mxu0 0.0
    %373 = vmatprep.subr.mxu0 0.0
    %374 = vmatpush2.xpose.msra.mxu0 0.0
    %375 = vmatprep.subr.mxu0 0.0
    %376 = vmatpush2.xpose.msra.mxu0 0.0
    %377 = vmatprep.subr.mxu0 0.0
    %378 = vmatpush2.xpose.msra.mxu0 0.0
    %379 = vmatprep.subr.mxu0 0.0
    %380 = vmatpush2.xpose.msra.mxu0 0.0
    %381 = vmatprep.subr.mxu0 0.0
    %382 = vmatpush2.xpose.msra.mxu0 0.0
    %383 = vmatprep.subr.mxu0 0.0
    %384 = vmatpush2.xpose.msra.mxu0 0.0
    %385 = vmatprep.subr.mxu0 0.0
    %386 = vmatpush2.xpose.msra.mxu0 0.0
    %387 = vmatprep.subr.mxu0 0.0
    %388 = vmatpush2.xpose.msra.mxu0 0.0
    %389 = vmatprep.mubr.f32.mxu0 0.0
    %390 = vmatmul.mubr.f32.gmra.mxu0 %v321
    %v391 = vpop.f32.mrf.mxu0
    %v392 = vadd.f32 0.0, %v391
    %v393 = vpop.f32.mrf.mxu0
    %394 = vdwg.mxu0
    %395 = vrot.lane.b32.xlu0 %v157, 96
    %v396 = vpop.permute.xlu0 %395
    %v397 = vsel %vm168, %v157, 0
    %v399 = vsel %vm168, %v396, 0
    %401 = vmatprep.subr.mxu0 0.0
    %402 = vmatpush1.xpose.msra.mxu0 0.0
    %403 = vmatprep.subr.mxu0 0.0
    %404 = vmatpush1.xpose.msra.mxu0 0.0
    %405 = vmatprep.subr.mxu0 0.0
    %406 = vmatpush1.xpose.msra.mxu0 0.0
    %407 = vmatprep.subr.mxu0 0.0
    %408 = vmatpush1.xpose.msra.mxu0 0.0
    %409 = vmatprep.subr.mxu0 0.0
    %410 = vmatpush1.xpose.msra.mxu0 0.0
    %411 = vmatprep.subr.mxu0 0.0
    %412 = vmatpush1.xpose.msra.mxu0 0.0
    %413 = vmatprep.subr.mxu0 0.0
    %414 = vmatpush1.xpose.msra.mxu0 0.0
    %415 = vmatprep.subr.mxu0 0.0
    %416 = vmatpush1.xpose.msra.mxu0 0.0
    %417 = vmatprep.subr.mxu0 0.0
    %418 = vmatpush1.xpose.msra.mxu0 0.0
    %419 = vmatprep.subr.mxu0 0.0
    %420 = vmatpush1.xpose.msra.mxu0 0.0
    %421 = vmatprep.subr.mxu0 0.0
    %422 = vmatpush1.xpose.msra.mxu0 0.0
    %423 = vmatprep.subr.mxu0 0.0
    %424 = vmatpush1.xpose.msra.mxu0 0.0
    %425 = vmatprep.subr.mxu0 0.0
    %426 = vmatpush1.xpose.msra.mxu0 0.0
    %427 = vmatprep.subr.mxu0 0.0
    %428 = vmatpush1.xpose.msra.mxu0 0.0
    %429 = vmatprep.subr.mxu0 0.0
    %430 = vmatpush1.xpose.msra.mxu0 0.0
    %431 = vmatprep.subr.mxu0 0.0
    %432 = vmatpush1.xpose.msra.mxu0 %v399
    %433 = vmatprep.subr.mxu0 0.0
    %434 = vmatpush2.xpose.msra.mxu0 0.0
    %435 = vmatprep.subr.mxu0 0.0
    %436 = vmatpush2.xpose.msra.mxu0 0.0
    %437 = vmatprep.subr.mxu0 0.0
    %438 = vmatpush2.xpose.msra.mxu0 0.0
    %439 = vmatprep.subr.mxu0 0.0
    %440 = vmatpush2.xpose.msra.mxu0 0.0
    %441 = vmatprep.subr.mxu0 0.0
    %442 = vmatpush2.xpose.msra.mxu0 0.0
    %443 = vmatprep.subr.mxu0 0.0
    %444 = vmatpush2.xpose.msra.mxu0 0.0
    %445 = vmatprep.subr.mxu0 0.0
    %446 = vmatpush2.xpose.msra.mxu0 0.0
    %447 = vmatprep.subr.mxu0 0.0
    %448 = vmatpush2.xpose.msra.mxu0 0.0
    %449 = vmatprep.subr.mxu0 0.0
    %450 = vmatpush2.xpose.msra.mxu0 0.0
    %451 = vmatprep.subr.mxu0 0.0
    %452 = vmatpush2.xpose.msra.mxu0 0.0
    %453 = vmatprep.subr.mxu0 0.0
    %454 = vmatpush2.xpose.msra.mxu0 0.0
    %455 = vmatprep.subr.mxu0 0.0
    %456 = vmatpush2.xpose.msra.mxu0 0.0
    %457 = vmatprep.subr.mxu0 0.0
    %458 = vmatpush2.xpose.msra.mxu0 0.0
    %459 = vmatprep.subr.mxu0 0.0
    %460 = vmatpush2.xpose.msra.mxu0 0.0
    %461 = vmatprep.subr.mxu0 0.0
    %462 = vmatpush2.xpose.msra.mxu0 0.0
    %463 = vmatprep.subr.mxu0 0.0
    %464 = vmatpush2.xpose.msra.mxu0 0.0
    %465 = vmatprep.mubr.f32.mxu0 0.0
    %466 = vmatmul.mubr.f32.gmra.mxu0 %v397
    %v467 = vpop.f32.mrf.mxu0
    %v468 = vadd.f32 0.0, %v467
    %v469 = vpop.f32.mrf.mxu0
    %470 = vdwg.mxu0
    %471 = vrot.lane.b32.xlu0 %v159, 96
    %v472 = vpop.permute.xlu0 %471
    %v473 = vsel %vm168, %v159, 0
    %v475 = vsel %vm168, %v472, 0
    %477 = vmatprep.subr.mxu0 0.0
    %478 = vmatpush1.xpose.msra.mxu0 0.0
    %479 = vmatprep.subr.mxu0 0.0
    %480 = vmatpush1.xpose.msra.mxu0 0.0
    %481 = vmatprep.subr.mxu0 0.0
    %482 = vmatpush1.xpose.msra.mxu0 0.0
    %483 = vmatprep.subr.mxu0 0.0
    %484 = vmatpush1.xpose.msra.mxu0 0.0
    %485 = vmatprep.subr.mxu0 0.0
    %486 = vmatpush1.xpose.msra.mxu0 0.0
    %487 = vmatprep.subr.mxu0 0.0
    %488 = vmatpush1.xpose.msra.mxu0 0.0
    %489 = vmatprep.subr.mxu0 0.0
    %490 = vmatpush1.xpose.msra.mxu0 0.0
    %491 = vmatprep.subr.mxu0 0.0
    %492 = vmatpush1.xpose.msra.mxu0 0.0
    %493 = vmatprep.subr.mxu0 0.0
    %494 = vmatpush1.xpose.msra.mxu0 0.0
    %495 = vmatprep.subr.mxu0 0.0
    %496 = vmatpush1.xpose.msra.mxu0 0.0
    %497 = vmatprep.subr.mxu0 0.0
    %498 = vmatpush1.xpose.msra.mxu0 0.0
    %499 = vmatprep.subr.mxu0 0.0
    %500 = vmatpush1.xpose.msra.mxu0 0.0
    %501 = vmatprep.subr.mxu0 0.0
    %502 = vmatpush1.xpose.msra.mxu0 0.0
    %503 = vmatprep.subr.mxu0 0.0
    %504 = vmatpush1.xpose.msra.mxu0 0.0
    %505 = vmatprep.subr.mxu0 0.0
    %506 = vmatpush1.xpose.msra.mxu0 0.0
    %507 = vmatprep.subr.mxu0 0.0
    %508 = vmatpush1.xpose.msra.mxu0 %v475
    %509 = vmatprep.subr.mxu0 0.0
    %510 = vmatpush2.xpose.msra.mxu0 0.0
    %511 = vmatprep.subr.mxu0 0.0
    %512 = vmatpush2.xpose.msra.mxu0 0.0
    %513 = vmatprep.subr.mxu0 0.0
    %514 = vmatpush2.xpose.msra.mxu0 0.0
    %515 = vmatprep.subr.mxu0 0.0
    %516 = vmatpush2.xpose.msra.mxu0 0.0
    %517 = vmatprep.subr.mxu0 0.0
    %518 = vmatpush2.xpose.msra.mxu0 0.0
    %519 = vmatprep.subr.mxu0 0.0
    %520 = vmatpush2.xpose.msra.mxu0 0.0
    %521 = vmatprep.subr.mxu0 0.0
    %522 = vmatpush2.xpose.msra.mxu0 0.0
    %523 = vmatprep.subr.mxu0 0.0
    %524 = vmatpush2.xpose.msra.mxu0 0.0
    %525 = vmatprep.subr.mxu0 0.0
    %526 = vmatpush2.xpose.msra.mxu0 0.0
    %527 = vmatprep.subr.mxu0 0.0
    %528 = vmatpush2.xpose.msra.mxu0 0.0
    %529 = vmatprep.subr.mxu0 0.0
    %530 = vmatpush2.xpose.msra.mxu0 0.0
    %531 = vmatprep.subr.mxu0 0.0
    %532 = vmatpush2.xpose.msra.mxu0 0.0
    %533 = vmatprep.subr.mxu0 0.0
    %534 = vmatpush2.xpose.msra.mxu0 0.0
    %535 = vmatprep.subr.mxu0 0.0
    %536 = vmatpush2.xpose.msra.mxu0 0.0
    %537 = vmatprep.subr.mxu0 0.0
    %538 = vmatpush2.xpose.msra.mxu0 0.0
    %539 = vmatprep.subr.mxu0 0.0
    %540 = vmatpush2.xpose.msra.mxu0 0.0
    %541 = vmatprep.mubr.f32.mxu0 0.0
    %542 = vmatmul.mubr.f32.gmra.mxu0 %v473
    %v543 = vpop.f32.mrf.mxu0
    %v544 = vadd.f32 0.0, %v543
    %v545 = vpop.f32.mrf.mxu0
    %546 = vdwg.mxu0
    %547 = vrot.lane.b32.xlu0 %v161, 96
    %v548 = vpop.permute.xlu0 %547
    %v549 = vsel %vm168, %v161, 0
    %v551 = vsel %vm168, %v548, 0
    %553 = vmatprep.subr.mxu0 0.0
    %554 = vmatpush1.xpose.msra.mxu0 0.0
    %555 = vmatprep.subr.mxu0 0.0
    %556 = vmatpush1.xpose.msra.mxu0 0.0
    %557 = vmatprep.subr.mxu0 0.0
    %558 = vmatpush1.xpose.msra.mxu0 0.0
    %559 = vmatprep.subr.mxu0 0.0
    %560 = vmatpush1.xpose.msra.mxu0 0.0
    %561 = vmatprep.subr.mxu0 0.0
    %562 = vmatpush1.xpose.msra.mxu0 0.0
    %563 = vmatprep.subr.mxu0 0.0
    %564 = vmatpush1.xpose.msra.mxu0 0.0
    %565 = vmatprep.subr.mxu0 0.0
    %566 = vmatpush1.xpose.msra.mxu0 0.0
    %567 = vmatprep.subr.mxu0 0.0
    %568 = vmatpush1.xpose.msra.mxu0 0.0
    %569 = vmatprep.subr.mxu0 0.0
    %570 = vmatpush1.xpose.msra.mxu0 0.0
    %571 = vmatprep.subr.mxu0 0.0
    %572 = vmatpush1.xpose.msra.mxu0 0.0
    %573 = vmatprep.subr.mxu0 0.0
    %574 = vmatpush1.xpose.msra.mxu0 0.0
    %575 = vmatprep.subr.mxu0 0.0
    %576 = vmatpush1.xpose.msra.mxu0 0.0
    %577 = vmatprep.subr.mxu0 0.0
    %578 = vmatpush1.xpose.msra.mxu0 0.0
    %579 = vmatprep.subr.mxu0 0.0
    %580 = vmatpush1.xpose.msra.mxu0 0.0
    %581 = vmatprep.subr.mxu0 0.0
    %582 = vmatpush1.xpose.msra.mxu0 0.0
    %583 = vmatprep.subr.mxu0 0.0
    %584 = vmatpush1.xpose.msra.mxu0 %v551
    %585 = vmatprep.subr.mxu0 0.0
    %586 = vmatpush2.xpose.msra.mxu0 0.0
    %587 = vmatprep.subr.mxu0 0.0
    %588 = vmatpush2.xpose.msra.mxu0 0.0
    %589 = vmatprep.subr.mxu0 0.0
    %590 = vmatpush2.xpose.msra.mxu0 0.0
    %591 = vmatprep.subr.mxu0 0.0
    %592 = vmatpush2.xpose.msra.mxu0 0.0
    %593 = vmatprep.subr.mxu0 0.0
    %594 = vmatpush2.xpose.msra.mxu0 0.0
    %595 = vmatprep.subr.mxu0 0.0
    %596 = vmatpush2.xpose.msra.mxu0 0.0
    %597 = vmatprep.subr.mxu0 0.0
    %598 = vmatpush2.xpose.msra.mxu0 0.0
    %599 = vmatprep.subr.mxu0 0.0
    %600 = vmatpush2.xpose.msra.mxu0 0.0
    %601 = vmatprep.subr.mxu0 0.0
    %602 = vmatpush2.xpose.msra.mxu0 0.0
    %603 = vmatprep.subr.mxu0 0.0
    %604 = vmatpush2.xpose.msra.mxu0 0.0
    %605 = vmatprep.subr.mxu0 0.0
    %606 = vmatpush2.xpose.msra.mxu0 0.0
    %607 = vmatprep.subr.mxu0 0.0
    %608 = vmatpush2.xpose.msra.mxu0 0.0
    %609 = vmatprep.subr.mxu0 0.0
    %610 = vmatpush2.xpose.msra.mxu0 0.0
    %611 = vmatprep.subr.mxu0 0.0
    %612 = vmatpush2.xpose.msra.mxu0 0.0
    %613 = vmatprep.subr.mxu0 0.0
    %614 = vmatpush2.xpose.msra.mxu0 0.0
    %615 = vmatprep.subr.mxu0 0.0
    %616 = vmatpush2.xpose.msra.mxu0 0.0
    %617 = vmatprep.mubr.f32.mxu0 0.0
    %618 = vmatmul.mubr.f32.gmra.mxu0 %v549
    %v619 = vpop.f32.mrf.mxu0
    %v620 = vadd.f32 0.0, %v619
    %v621 = vpop.f32.mrf.mxu0
    %622 = vdwg.mxu0
    %623 = vrot.lane.b32.xlu0 %v163, 96
    %v624 = vpop.permute.xlu0 %623
    %v625 = vsel %vm168, %v163, 0
    %v627 = vsel %vm168, %v624, 0
    %629 = vmatprep.subr.mxu0 0.0
    %630 = vmatpush1.xpose.msra.mxu0 0.0
    %631 = vmatprep.subr.mxu0 0.0
    %632 = vmatpush1.xpose.msra.mxu0 0.0
    %633 = vmatprep.subr.mxu0 0.0
    %634 = vmatpush1.xpose.msra.mxu0 0.0
    %635 = vmatprep.subr.mxu0 0.0
    %636 = vmatpush1.xpose.msra.mxu0 0.0
    %637 = vmatprep.subr.mxu0 0.0
    %638 = vmatpush1.xpose.msra.mxu0 0.0
    %639 = vmatprep.subr.mxu0 0.0
    %640 = vmatpush1.xpose.msra.mxu0 0.0
    %641 = vmatprep.subr.mxu0 0.0
    %642 = vmatpush1.xpose.msra.mxu0 0.0
    %643 = vmatprep.subr.mxu0 0.0
    %644 = vmatpush1.xpose.msra.mxu0 0.0
    %645 = vmatprep.subr.mxu0 0.0
    %646 = vmatpush1.xpose.msra.mxu0 0.0
    %647 = vmatprep.subr.mxu0 0.0
    %648 = vmatpush1.xpose.msra.mxu0 0.0
    %649 = vmatprep.subr.mxu0 0.0
    %650 = vmatpush1.xpose.msra.mxu0 0.0
    %651 = vmatprep.subr.mxu0 0.0
    %652 = vmatpush1.xpose.msra.mxu0 0.0
    %653 = vmatprep.subr.mxu0 0.0
    %654 = vmatpush1.xpose.msra.mxu0 0.0
    %655 = vmatprep.subr.mxu0 0.0
    %656 = vmatpush1.xpose.msra.mxu0 0.0
    %657 = vmatprep.subr.mxu0 0.0
    %658 = vmatpush1.xpose.msra.mxu0 0.0
    %659 = vmatprep.subr.mxu0 0.0
    %660 = vmatpush1.xpose.msra.mxu0 %v627
    %661 = vmatprep.subr.mxu0 0.0
    %662 = vmatpush2.xpose.msra.mxu0 0.0
    %663 = vmatprep.subr.mxu0 0.0
    %664 = vmatpush2.xpose.msra.mxu0 0.0
    %665 = vmatprep.subr.mxu0 0.0
    %666 = vmatpush2.xpose.msra.mxu0 0.0
    %667 = vmatprep.subr.mxu0 0.0
    %668 = vmatpush2.xpose.msra.mxu0 0.0
    %669 = vmatprep.subr.mxu0 0.0
    %670 = vmatpush2.xpose.msra.mxu0 0.0
    %671 = vmatprep.subr.mxu0 0.0
    %672 = vmatpush2.xpose.msra.mxu0 0.0
    %673 = vmatprep.subr.mxu0 0.0
    %674 = vmatpush2.xpose.msra.mxu0 0.0
    %675 = vmatprep.subr.mxu0 0.0
    %676 = vmatpush2.xpose.msra.mxu0 0.0
    %677 = vmatprep.subr.mxu0 0.0
    %678 = vmatpush2.xpose.msra.mxu0 0.0
    %679 = vmatprep.subr.mxu0 0.0
    %680 = vmatpush2.xpose.msra.mxu0 0.0
    %681 = vmatprep.subr.mxu0 0.0
    %682 = vmatpush2.xpose.msra.mxu0 0.0
    %683 = vmatprep.subr.mxu0 0.0
    %684 = vmatpush2.xpose.msra.mxu0 0.0
    %685 = vmatprep.subr.mxu0 0.0
    %686 = vmatpush2.xpose.msra.mxu0 0.0
    %687 = vmatprep.subr.mxu0 0.0
    %688 = vmatpush2.xpose.msra.mxu0 0.0
    %689 = vmatprep.subr.mxu0 0.0
    %690 = vmatpush2.xpose.msra.mxu0 0.0
    %691 = vmatprep.subr.mxu0 0.0
    %692 = vmatpush2.xpose.msra.mxu0 0.0
    %693 = vmatprep.mubr.f32.mxu0 0.0
    %694 = vmatmul.mubr.f32.gmra.mxu0 %v625
    %v695 = vpop.f32.mrf.mxu0
    %v696 = vadd.f32 0.0, %v695
    %v697 = vpop.f32.mrf.mxu0
    %698 = vdwg.mxu0
    %699 = vrot.lane.b32.xlu0 %v165, 96
    %v700 = vpop.permute.xlu0 %699
    %v701 = vsel %vm168, %v165, 0
    %v703 = vsel %vm168, %v700, 0
    %705 = vmatprep.subr.mxu0 0.0
    %706 = vmatpush1.xpose.msra.mxu0 0.0
    %707 = vmatprep.subr.mxu0 0.0
    %708 = vmatpush1.xpose.msra.mxu0 0.0
    %709 = vmatprep.subr.mxu0 0.0
    %710 = vmatpush1.xpose.msra.mxu0 0.0
    %711 = vmatprep.subr.mxu0 0.0
    %712 = vmatpush1.xpose.msra.mxu0 0.0
    %713 = vmatprep.subr.mxu0 0.0
    %714 = vmatpush1.xpose.msra.mxu0 0.0
    %715 = vmatprep.subr.mxu0 0.0
    %716 = vmatpush1.xpose.msra.mxu0 0.0
    %717 = vmatprep.subr.mxu0 0.0
    %718 = vmatpush1.xpose.msra.mxu0 0.0
    %719 = vmatprep.subr.mxu0 0.0
    %720 = vmatpush1.xpose.msra.mxu0 0.0
    %721 = vmatprep.subr.mxu0 0.0
    %722 = vmatpush1.xpose.msra.mxu0 0.0
    %723 = vmatprep.subr.mxu0 0.0
    %724 = vmatpush1.xpose.msra.mxu0 0.0
    %725 = vmatprep.subr.mxu0 0.0
    %726 = vmatpush1.xpose.msra.mxu0 0.0
    %727 = vmatprep.subr.mxu0 0.0
    %728 = vmatpush1.xpose.msra.mxu0 0.0
    %729 = vmatprep.subr.mxu0 0.0
    %730 = vmatpush1.xpose.msra.mxu0 0.0
    %731 = vmatprep.subr.mxu0 0.0
    %732 = vmatpush1.xpose.msra.mxu0 0.0
    %733 = vmatprep.subr.mxu0 0.0
    %734 = vmatpush1.xpose.msra.mxu0 0.0
    %735 = vmatprep.subr.mxu0 0.0
    %736 = vmatpush1.xpose.msra.mxu0 %v703
    %737 = vmatprep.subr.mxu0 0.0
    %738 = vmatpush2.xpose.msra.mxu0 0.0
    %739 = vmatprep.subr.mxu0 0.0
    %740 = vmatpush2.xpose.msra.mxu0 0.0
    %741 = vmatprep.subr.mxu0 0.0
    %742 = vmatpush2.xpose.msra.mxu0 0.0
    %743 = vmatprep.subr.mxu0 0.0
    %744 = vmatpush2.xpose.msra.mxu0 0.0
    %745 = vmatprep.subr.mxu0 0.0
    %746 = vmatpush2.xpose.msra.mxu0 0.0
    %747 = vmatprep.subr.mxu0 0.0
    %748 = vmatpush2.xpose.msra.mxu0 0.0
    %749 = vmatprep.subr.mxu0 0.0
    %750 = vmatpush2.xpose.msra.mxu0 0.0
    %751 = vmatprep.subr.mxu0 0.0
    %752 = vmatpush2.xpose.msra.mxu0 0.0
    %753 = vmatprep.subr.mxu0 0.0
    %754 = vmatpush2.xpose.msra.mxu0 0.0
    %755 = vmatprep.subr.mxu0 0.0
    %756 = vmatpush2.xpose.msra.mxu0 0.0
    %757 = vmatprep.subr.mxu0 0.0
    %758 = vmatpush2.xpose.msra.mxu0 0.0
    %759 = vmatprep.subr.mxu0 0.0
    %760 = vmatpush2.xpose.msra.mxu0 0.0
    %761 = vmatprep.subr.mxu0 0.0
    %762 = vmatpush2.xpose.msra.mxu0 0.0
    %763 = vmatprep.subr.mxu0 0.0
    %764 = vmatpush2.xpose.msra.mxu0 0.0
    %765 = vmatprep.subr.mxu0 0.0
    %766 = vmatpush2.xpose.msra.mxu0 0.0
    %767 = vmatprep.subr.mxu0 0.0
    %768 = vmatpush2.xpose.msra.mxu0 0.0
    %769 = vmatprep.mubr.f32.mxu0 0.0
    %770 = vmatmul.mubr.f32.gmra.mxu0 %v701
    %v771 = vpop.f32.mrf.mxu0
    %v772 = vadd.f32 0.0, %v771
    %v773 = vpop.f32.mrf.mxu0
    %774 = vdwg.mxu0
    %v775 = vmul.f32 %v240, 0.35355338
    %v776 = vmul.f32 %v316, 0.35355338
    %v777 = vmul.f32 %v392, 0.35355338
    %v778 = vmul.f32 %v468, 0.35355338
    %v779 = vmul.f32 %v544, 0.35355338
    %v780 = vmul.f32 %v620, 0.35355338
    %v781 = vmul.f32 %v696, 0.35355338
    %v782 = vmul.f32 %v772, 0.35355338
    %v783 = vsel %vm168, %v775, -inf
    %784 = vmax.xlane.f32.xlu0 %v783
    %v785 = vpop.xlane.xlu0 %784
    %v786 = vsel %vm168, %v776, -inf
    %787 = vmax.xlane.f32.xlu0 %v786
    %v788 = vpop.xlane.xlu0 %787
    %v789 = vsel %vm168, %v777, -inf
    %790 = vmax.xlane.f32.xlu0 %v789
    %v791 = vpop.xlane.xlu0 %790
    %v792 = vsel %vm168, %v778, -inf
    %793 = vmax.xlane.f32.xlu0 %v792
    %v794 = vpop.xlane.xlu0 %793
    %v795 = vsel %vm168, %v779, -inf
    %796 = vmax.xlane.f32.xlu0 %v795
    %v797 = vpop.xlane.xlu0 %796
    %v798 = vsel %vm168, %v780, -inf
    %799 = vmax.xlane.f32.xlu0 %v798
    %v800 = vpop.xlane.xlu0 %799
    %v801 = vsel %vm168, %v781, -inf
    %802 = vmax.xlane.f32.xlu0 %v801
    %v803 = vpop.xlane.xlu0 %802
    %v804 = vsel %vm168, %v782, -inf
    %805 = vmax.xlane.f32.xlu0 %v804
    %v806 = vpop.xlane.xlu0 %805
    %v807 = vsub.f32 %v775, %v785
    %v808 = vsub.f32 %v776, %v788
    %v809 = vsub.f32 %v777, %v791
    %v810 = vsub.f32 %v778, %v794
    %v811 = vsub.f32 %v779, %v797
    %v812 = vsub.f32 %v780, %v800
    %v813 = vsub.f32 %v781, %v803
    %v814 = vsub.f32 %v782, %v806
    %v815 = vmul.f32 %v807, 1.442695
    %v816 = vpow.pop %v815
    %v817 = vmul.f32 %v808, 1.442695
    %v818 = vpow.pop %v817
    %v819 = vmul.f32 %v809, 1.442695
    %v820 = vpow.pop %v819
    %v821 = vmul.f32 %v810, 1.442695
    %v822 = vpow.pop %v821
    %v823 = vmul.f32 %v811, 1.442695
    %v824 = vpow.pop %v823
    %v825 = vmul.f32 %v812, 1.442695
    %v826 = vpow.pop %v825
    %v827 = vmul.f32 %v813, 1.442695
    %v828 = vpow.pop %v827
    %v829 = vmul.f32 %v814, 1.442695
    %v830 = vpow.pop %v829
    %v831 = vsel %vm168, %v816, 0.0
    %832 = vadd.xlane.f32.xlu0 %v831
    %v833 = vpop.xlane.xlu0 %832
    %v834 = vsel %vm168, %v818, 0.0
    %835 = vadd.xlane.f32.xlu0 %v834
    %v836 = vpop.xlane.xlu0 %835
    %v837 = vsel %vm168, %v820, 0.0
    %838 = vadd.xlane.f32.xlu0 %v837
    %v839 = vpop.xlane.xlu0 %838
    %v840 = vsel %vm168, %v822, 0.0
    %841 = vadd.xlane.f32.xlu0 %v840
    %v842 = vpop.xlane.xlu0 %841
    %v843 = vsel %vm168, %v824, 0.0
    %844 = vadd.xlane.f32.xlu0 %v843
    %v845 = vpop.xlane.xlu0 %844
    %v846 = vsel %vm168, %v826, 0.0
    %847 = vadd.xlane.f32.xlu0 %v846
    %v848 = vpop.xlane.xlu0 %847
    %v849 = vsel %vm168, %v828, 0.0
    %850 = vadd.xlane.f32.xlu0 %v849
    %v851 = vpop.xlane.xlu0 %850
    %v852 = vsel %vm168, %v830, 0.0
    %853 = vadd.xlane.f32.xlu0 %v852
    %v854 = vpop.xlane.xlu0 %853
    %v855 = vrcp.pop %v833
    %v856 = vrcp.pop %v836
    %v857 = vrcp.pop %v839
    %v858 = vrcp.pop %v842
    %v859 = vrcp.pop %v845
    %v860 = vrcp.pop %v848
    %v861 = vrcp.pop %v851
    %v862 = vrcp.pop %v854
    %v863 = vmul.f32 %v833, %v855
    %v864 = vmul.f32 %v836, %v856
    %v865 = vmul.f32 %v839, %v857
    %v866 = vmul.f32 %v842, %v858
    %v867 = vmul.f32 %v845, %v859
    %v868 = vmul.f32 %v848, %v860
    %v869 = vmul.f32 %v851, %v861
    %v870 = vmul.f32 %v854, %v862
    %v871 = vsub.f32 2.0, %v863
    %v872 = vsub.f32 2.0, %v864
    %v873 = vsub.f32 2.0, %v865
    %v874 = vsub.f32 2.0, %v866
    %v875 = vsub.f32 2.0, %v867
    %v876 = vsub.f32 2.0, %v868
    %v877 = vsub.f32 2.0, %v869
    %v878 = vsub.f32 2.0, %v870
    %v879 = vmul.f32 %v855, %v871
    %v880 = vmul.f32 %v856, %v872
    %v881 = vmul.f32 %v857, %v873
    %v882 = vmul.f32 %v858, %v874
    %v883 = vmul.f32 %v859, %v875
    %v884 = vmul.f32 %v860, %v876
    %v885 = vmul.f32 %v861, %v877
    %v886 = vmul.f32 %v862, %v878
    %v887 = vmul.f32 %v816, %v879
    %v888 = vmul.f32 %v818, %v880
    %v889 = vmul.f32 %v820, %v881
    %v890 = vmul.f32 %v822, %v882
    %v891 = vmul.f32 %v824, %v883
    %v892 = vmul.f32 %v826, %v884
    %v893 = vmul.f32 %v828, %v885
    %v894 = vmul.f32 %v830, %v886
    %895 = vrot.lane.b32.xlu0 %v146, 64
    %v896 = vpop.permute.xlu0 %895
    %v899 = vsel %vm168, %v887, 0
    %901 = vmatprep.subr.mxu0 0.0
    %902 = vmatpush1.msra.mxu0 0.0
    %903 = vmatprep.subr.mxu0 0.0
    %904 = vmatpush1.msra.mxu0 0.0
    %905 = vmatprep.subr.mxu0 0.0
    %906 = vmatpush1.msra.mxu0 0.0
    %907 = vmatprep.subr.mxu0 0.0
    %908 = vmatpush1.msra.mxu0 0.0
    %909 = vmatprep.subr.mxu0 0.0
    %910 = vmatpush1.msra.mxu0 0.0
    %911 = vmatprep.subr.mxu0 0.0
    %912 = vmatpush1.msra.mxu0 0.0
    %913 = vmatprep.subr.mxu0 0.0
    %914 = vmatpush1.msra.mxu0 0.0
    %915 = vmatprep.subr.mxu0 0.0
    %916 = vmatpush1.msra.mxu0 0.0
    %917 = vmatprep.subr.mxu0 0.0
    %918 = vmatpush1.msra.mxu0 0.0
    %919 = vmatprep.subr.mxu0 0.0
    %920 = vmatpush1.msra.mxu0 0.0
    %921 = vmatprep.subr.mxu0 0.0
    %922 = vmatpush1.msra.mxu0 0.0
    %923 = vmatprep.subr.mxu0 0.0
    %924 = vmatpush1.msra.mxu0 0.0
    %925 = vmatprep.subr.mxu0 0.0
    %926 = vmatpush1.msra.mxu0 0.0
    %927 = vmatprep.subr.mxu0 0.0
    %928 = vmatpush1.msra.mxu0 0.0
    %929 = vmatprep.subr.mxu0 0.0
    %930 = vmatpush1.msra.mxu0 0.0
    %931 = vmatprep.subr.mxu0 0.0
    %932 = vmatpush1.msra.mxu0 %v896
    %933 = vmatprep.subr.mxu0 0.0
    %934 = vmatpush2.msra.mxu0 0.0
    %935 = vmatprep.subr.mxu0 0.0
    %936 = vmatpush2.msra.mxu0 0.0
    %937 = vmatprep.subr.mxu0 0.0
    %938 = vmatpush2.msra.mxu0 0.0
    %939 = vmatprep.subr.mxu0 0.0
    %940 = vmatpush2.msra.mxu0 0.0
    %941 = vmatprep.subr.mxu0 0.0
    %942 = vmatpush2.msra.mxu0 0.0
    %943 = vmatprep.subr.mxu0 0.0
    %944 = vmatpush2.msra.mxu0 0.0
    %945 = vmatprep.subr.mxu0 0.0
    %946 = vmatpush2.msra.mxu0 0.0
    %947 = vmatprep.subr.mxu0 0.0
    %948 = vmatpush2.msra.mxu0 0.0
    %949 = vmatprep.subr.mxu0 0.0
    %950 = vmatpush2.msra.mxu0 0.0
    %951 = vmatprep.subr.mxu0 0.0
    %952 = vmatpush2.msra.mxu0 0.0
    %953 = vmatprep.subr.mxu0 0.0
    %954 = vmatpush2.msra.mxu0 0.0
    %955 = vmatprep.subr.mxu0 0.0
    %956 = vmatpush2.msra.mxu0 0.0
    %957 = vmatprep.subr.mxu0 0.0
    %958 = vmatpush2.msra.mxu0 0.0
    %959 = vmatprep.subr.mxu0 0.0
    %960 = vmatpush2.msra.mxu0 0.0
    %961 = vmatprep.subr.mxu0 0.0
    %962 = vmatpush2.msra.mxu0 0.0
    %963 = vmatprep.subr.mxu0 0.0
    %964 = vmatpush2.msra.mxu0 0.0
    %965 = vmatprep.mubr.f32.mxu0 0.0
    %966 = vmatmul.mubr.f32.gmra.mxu0 %v899
    %v967 = vpop.f32.mrf.mxu0
    %v968 = vadd.f32 0.0, %v967
    %v969 = vpop.f32.mrf.mxu0
    %970 = vdwg.mxu0
    %971 = vrot.lane.b32.xlu0 %v149, 64
    %v972 = vpop.permute.xlu0 %971
    %v975 = vsel %vm168, %v888, 0
    %977 = vmatprep.subr.mxu0 0.0
    %978 = vmatpush1.msra.mxu0 0.0
    %979 = vmatprep.subr.mxu0 0.0
    %980 = vmatpush1.msra.mxu0 0.0
    %981 = vmatprep.subr.mxu0 0.0
    %982 = vmatpush1.msra.mxu0 0.0
    %983 = vmatprep.subr.mxu0 0.0
    %984 = vmatpush1.msra.mxu0 0.0
    %985 = vmatprep.subr.mxu0 0.0
    %986 = vmatpush1.msra.mxu0 0.0
    %987 = vmatprep.subr.mxu0 0.0
    %988 = vmatpush1.msra.mxu0 0.0
    %989 = vmatprep.subr.mxu0 0.0
    %990 = vmatpush1.msra.mxu0 0.0
    %991 = vmatprep.subr.mxu0 0.0
    %992 = vmatpush1.msra.mxu0 0.0
    %993 = vmatprep.subr.mxu0 0.0
    %994 = vmatpush1.msra.mxu0 0.0
    %995 = vmatprep.subr.mxu0 0.0
    %996 = vmatpush1.msra.mxu0 0.0
    %997 = vmatprep.subr.mxu0 0.0
    %998 = vmatpush1.msra.mxu0 0.0
    %999 = vmatprep.subr.mxu0 0.0
    %1000 = vmatpush1.msra.mxu0 0.0
    %1001 = vmatprep.subr.mxu0 0.0
    %1002 = vmatpush1.msra.mxu0 0.0
    %1003 = vmatprep.subr.mxu0 0.0
    %1004 = vmatpush1.msra.mxu0 0.0
    %1005 = vmatprep.subr.mxu0 0.0
    %1006 = vmatpush1.msra.mxu0 0.0
    %1007 = vmatprep.subr.mxu0 0.0
    %1008 = vmatpush1.msra.mxu0 %v972
    %1009 = vmatprep.subr.mxu0 0.0
    %1010 = vmatpush2.msra.mxu0 0.0
    %1011 = vmatprep.subr.mxu0 0.0
    %1012 = vmatpush2.msra.mxu0 0.0
    %1013 = vmatprep.subr.mxu0 0.0
    %1014 = vmatpush2.msra.mxu0 0.0
    %1015 = vmatprep.subr.mxu0 0.0
    %1016 = vmatpush2.msra.mxu0 0.0
    %1017 = vmatprep.subr.mxu0 0.0
    %1018 = vmatpush2.msra.mxu0 0.0
    %1019 = vmatprep.subr.mxu0 0.0
    %1020 = vmatpush2.msra.mxu0 0.0
    %1021 = vmatprep.subr.mxu0 0.0
    %1022 = vmatpush2.msra.mxu0 0.0
    %1023 = vmatprep.subr.mxu0 0.0
    %1024 = vmatpush2.msra.mxu0 0.0
    %1025 = vmatprep.subr.mxu0 0.0
    %1026 = vmatpush2.msra.mxu0 0.0
    %1027 = vmatprep.subr.mxu0 0.0
    %1028 = vmatpush2.msra.mxu0 0.0
    %1029 = vmatprep.subr.mxu0 0.0
    %1030 = vmatpush2.msra.mxu0 0.0
    %1031 = vmatprep.subr.mxu0 0.0
    %1032 = vmatpush2.msra.mxu0 0.0
    %1033 = vmatprep.subr.mxu0 0.0
    %1034 = vmatpush2.msra.mxu0 0.0
    %1035 = vmatprep.subr.mxu0 0.0
    %1036 = vmatpush2.msra.mxu0 0.0
    %1037 = vmatprep.subr.mxu0 0.0
    %1038 = vmatpush2.msra.mxu0 0.0
    %1039 = vmatprep.subr.mxu0 0.0
    %1040 = vmatpush2.msra.mxu0 0.0
    %1041 = vmatprep.mubr.f32.mxu0 0.0
    %1042 = vmatmul.mubr.f32.gmra.mxu0 %v975
    %v1043 = vpop.f32.mrf.mxu0
    %v1044 = vadd.f32 0.0, %v1043
    %v1045 = vpop.f32.mrf.mxu0
    %1046 = vdwg.mxu0
    %1047 = vrot.lane.b32.xlu0 %v155, 64
    %v1048 = vpop.permute.xlu0 %1047
    %v1051 = vsel %vm168, %v889, 0
    %1053 = vmatprep.subr.mxu0 0.0
    %1054 = vmatpush1.msra.mxu0 0.0
    %1055 = vmatprep.subr.mxu0 0.0
    %1056 = vmatpush1.msra.mxu0 0.0
    %1057 = vmatprep.subr.mxu0 0.0
    %1058 = vmatpush1.msra.mxu0 0.0
    %1059 = vmatprep.subr.mxu0 0.0
    %1060 = vmatpush1.msra.mxu0 0.0
    %1061 = vmatprep.subr.mxu0 0.0
    %1062 = vmatpush1.msra.mxu0 0.0
    %1063 = vmatprep.subr.mxu0 0.0
    %1064 = vmatpush1.msra.mxu0 0.0
    %1065 = vmatprep.subr.mxu0 0.0
    %1066 = vmatpush1.msra.mxu0 0.0
    %1067 = vmatprep.subr.mxu0 0.0
    %1068 = vmatpush1.msra.mxu0 0.0
    %1069 = vmatprep.subr.mxu0 0.0
    %1070 = vmatpush1.msra.mxu0 0.0
    %1071 = vmatprep.subr.mxu0 0.0
    %1072 = vmatpush1.msra.mxu0 0.0
    %1073 = vmatprep.subr.mxu0 0.0
    %1074 = vmatpush1.msra.mxu0 0.0
    %1075 = vmatprep.subr.mxu0 0.0
    %1076 = vmatpush1.msra.mxu0 0.0
    %1077 = vmatprep.subr.mxu0 0.0
    %1078 = vmatpush1.msra.mxu0 0.0
    %1079 = vmatprep.subr.mxu0 0.0
    %1080 = vmatpush1.msra.mxu0 0.0
    %1081 = vmatprep.subr.mxu0 0.0
    %1082 = vmatpush1.msra.mxu0 0.0
    %1083 = vmatprep.subr.mxu0 0.0
    %1084 = vmatpush1.msra.mxu0 %v1048
    %1085 = vmatprep.subr.mxu0 0.0
    %1086 = vmatpush2.msra.mxu0 0.0
    %1087 = vmatprep.subr.mxu0 0.0
    %1088 = vmatpush2.msra.mxu0 0.0
    %1089 = vmatprep.subr.mxu0 0.0
    %1090 = vmatpush2.msra.mxu0 0.0
    %1091 = vmatprep.subr.mxu0 0.0
    %1092 = vmatpush2.msra.mxu0 0.0
    %1093 = vmatprep.subr.mxu0 0.0
    %1094 = vmatpush2.msra.mxu0 0.0
    %1095 = vmatprep.subr.mxu0 0.0
    %1096 = vmatpush2.msra.mxu0 0.0
    %1097 = vmatprep.subr.mxu0 0.0
    %1098 = vmatpush2.msra.mxu0 0.0
    %1099 = vmatprep.subr.mxu0 0.0
    %1100 = vmatpush2.msra.mxu0 0.0
    %1101 = vmatprep.subr.mxu0 0.0
    %1102 = vmatpush2.msra.mxu0 0.0
    %1103 = vmatprep.subr.mxu0 0.0
    %1104 = vmatpush2.msra.mxu0 0.0
    %1105 = vmatprep.subr.mxu0 0.0
    %1106 = vmatpush2.msra.mxu0 0.0
    %1107 = vmatprep.subr.mxu0 0.0
    %1108 = vmatpush2.msra.mxu0 0.0
    %1109 = vmatprep.subr.mxu0 0.0
    %1110 = vmatpush2.msra.mxu0 0.0
    %1111 = vmatprep.subr.mxu0 0.0
    %1112 = vmatpush2.msra.mxu0 0.0
    %1113 = vmatprep.subr.mxu0 0.0
    %1114 = vmatpush2.msra.mxu0 0.0
    %1115 = vmatprep.subr.mxu0 0.0
    %1116 = vmatpush2.msra.mxu0 0.0
    %1117 = vmatprep.mubr.f32.mxu0 0.0
    %1118 = vmatmul.mubr.f32.gmra.mxu0 %v1051
    %v1119 = vpop.f32.mrf.mxu0
    %v1120 = vadd.f32 0.0, %v1119
    %v1121 = vpop.f32.mrf.mxu0
    %1122 = vdwg.mxu0
    %1123 = vrot.lane.b32.xlu0 %v157, 64
    %v1124 = vpop.permute.xlu0 %1123
    %v1127 = vsel %vm168, %v890, 0
    %1129 = vmatprep.subr.mxu0 0.0
    %1130 = vmatpush1.msra.mxu0 0.0
    %1131 = vmatprep.subr.mxu0 0.0
    %1132 = vmatpush1.msra.mxu0 0.0
    %1133 = vmatprep.subr.mxu0 0.0
    %1134 = vmatpush1.msra.mxu0 0.0
    %1135 = vmatprep.subr.mxu0 0.0
    %1136 = vmatpush1.msra.mxu0 0.0
    %1137 = vmatprep.subr.mxu0 0.0
    %1138 = vmatpush1.msra.mxu0 0.0
    %1139 = vmatprep.subr.mxu0 0.0
    %1140 = vmatpush1.msra.mxu0 0.0
    %1141 = vmatprep.subr.mxu0 0.0
    %1142 = vmatpush1.msra.mxu0 0.0
    %1143 = vmatprep.subr.mxu0 0.0
    %1144 = vmatpush1.msra.mxu0 0.0
    %1145 = vmatprep.subr.mxu0 0.0
    %1146 = vmatpush1.msra.mxu0 0.0
    %1147 = vmatprep.subr.mxu0 0.0
    %1148 = vmatpush1.msra.mxu0 0.0
    %1149 = vmatprep.subr.mxu0 0.0
    %1150 = vmatpush1.msra.mxu0 0.0
    %1151 = vmatprep.subr.mxu0 0.0
    %1152 = vmatpush1.msra.mxu0 0.0
    %1153 = vmatprep.subr.mxu0 0.0
    %1154 = vmatpush1.msra.mxu0 0.0
    %1155 = vmatprep.subr.mxu0 0.0
    %1156 = vmatpush1.msra.mxu0 0.0
    %1157 = vmatprep.subr.mxu0 0.0
    %1158 = vmatpush1.msra.mxu0 0.0
    %1159 = vmatprep.subr.mxu0 0.0
    %1160 = vmatpush1.msra.mxu0 %v1124
    %1161 = vmatprep.subr.mxu0 0.0
    %1162 = vmatpush2.msra.mxu0 0.0
    %1163 = vmatprep.subr.mxu0 0.0
    %1164 = vmatpush2.msra.mxu0 0.0
    %1165 = vmatprep.subr.mxu0 0.0
    %1166 = vmatpush2.msra.mxu0 0.0
    %1167 = vmatprep.subr.mxu0 0.0
    %1168 = vmatpush2.msra.mxu0 0.0
    %1169 = vmatprep.subr.mxu0 0.0
    %1170 = vmatpush2.msra.mxu0 0.0
    %1171 = vmatprep.subr.mxu0 0.0
    %1172 = vmatpush2.msra.mxu0 0.0
    %1173 = vmatprep.subr.mxu0 0.0
    %1174 = vmatpush2.msra.mxu0 0.0
    %1175 = vmatprep.subr.mxu0 0.0
    %1176 = vmatpush2.msra.mxu0 0.0
    %1177 = vmatprep.subr.mxu0 0.0
    %1178 = vmatpush2.msra.mxu0 0.0
    %1179 = vmatprep.subr.mxu0 0.0
    %1180 = vmatpush2.msra.mxu0 0.0
    %1181 = vmatprep.subr.mxu0 0.0
    %1182 = vmatpush2.msra.mxu0 0.0
    %1183 = vmatprep.subr.mxu0 0.0
    %1184 = vmatpush2.msra.mxu0 0.0
    %1185 = vmatprep.subr.mxu0 0.0
    %1186 = vmatpush2.msra.mxu0 0.0
    %1187 = vmatprep.subr.mxu0 0.0
    %1188 = vmatpush2.msra.mxu0 0.0
    %1189 = vmatprep.subr.mxu0 0.0
    %1190 = vmatpush2.msra.mxu0 0.0
    %1191 = vmatprep.subr.mxu0 0.0
    %1192 = vmatpush2.msra.mxu0 0.0
    %1193 = vmatprep.mubr.f32.mxu0 0.0
    %1194 = vmatmul.mubr.f32.gmra.mxu0 %v1127
    %v1195 = vpop.f32.mrf.mxu0
    %v1196 = vadd.f32 0.0, %v1195
    %v1197 = vpop.f32.mrf.mxu0
    %1198 = vdwg.mxu0
    %1199 = vrot.lane.b32.xlu0 %v159, 64
    %v1200 = vpop.permute.xlu0 %1199
    %v1203 = vsel %vm168, %v891, 0
    %1205 = vmatprep.subr.mxu0 0.0
    %1206 = vmatpush1.msra.mxu0 0.0
    %1207 = vmatprep.subr.mxu0 0.0
    %1208 = vmatpush1.msra.mxu0 0.0
    %1209 = vmatprep.subr.mxu0 0.0
    %1210 = vmatpush1.msra.mxu0 0.0
    %1211 = vmatprep.subr.mxu0 0.0
    %1212 = vmatpush1.msra.mxu0 0.0
    %1213 = vmatprep.subr.mxu0 0.0
    %1214 = vmatpush1.msra.mxu0 0.0
    %1215 = vmatprep.subr.mxu0 0.0
    %1216 = vmatpush1.msra.mxu0 0.0
    %1217 = vmatprep.subr.mxu0 0.0
    %1218 = vmatpush1.msra.mxu0 0.0
    %1219 = vmatprep.subr.mxu0 0.0
    %1220 = vmatpush1.msra.mxu0 0.0
    %1221 = vmatprep.subr.mxu0 0.0
    %1222 = vmatpush1.msra.mxu0 0.0
    %1223 = vmatprep.subr.mxu0 0.0
    %1224 = vmatpush1.msra.mxu0 0.0
    %1225 = vmatprep.subr.mxu0 0.0
    %1226 = vmatpush1.msra.mxu0 0.0
    %1227 = vmatprep.subr.mxu0 0.0
    %1228 = vmatpush1.msra.mxu0 0.0
    %1229 = vmatprep.subr.mxu0 0.0
    %1230 = vmatpush1.msra.mxu0 0.0
    %1231 = vmatprep.subr.mxu0 0.0
    %1232 = vmatpush1.msra.mxu0 0.0
    %1233 = vmatprep.subr.mxu0 0.0
    %1234 = vmatpush1.msra.mxu0 0.0
    %1235 = vmatprep.subr.mxu0 0.0
    %1236 = vmatpush1.msra.mxu0 %v1200
    %1237 = vmatprep.subr.mxu0 0.0
    %1238 = vmatpush2.msra.mxu0 0.0
    %1239 = vmatprep.subr.mxu0 0.0
    %1240 = vmatpush2.msra.mxu0 0.0
    %1241 = vmatprep.subr.mxu0 0.0
    %1242 = vmatpush2.msra.mxu0 0.0
    %1243 = vmatprep.subr.mxu0 0.0
    %1244 = vmatpush2.msra.mxu0 0.0
    %1245 = vmatprep.subr.mxu0 0.0
    %1246 = vmatpush2.msra.mxu0 0.0
    %1247 = vmatprep.subr.mxu0 0.0
    %1248 = vmatpush2.msra.mxu0 0.0
    %1249 = vmatprep.subr.mxu0 0.0
    %1250 = vmatpush2.msra.mxu0 0.0
    %1251 = vmatprep.subr.mxu0 0.0
    %1252 = vmatpush2.msra.mxu0 0.0
    %1253 = vmatprep.subr.mxu0 0.0
    %1254 = vmatpush2.msra.mxu0 0.0
    %1255 = vmatprep.subr.mxu0 0.0
    %1256 = vmatpush2.msra.mxu0 0.0
    %1257 = vmatprep.subr.mxu0 0.0
    %1258 = vmatpush2.msra.mxu0 0.0
    %1259 = vmatprep.subr.mxu0 0.0
    %1260 = vmatpush2.msra.mxu0 0.0
    %1261 = vmatprep.subr.mxu0 0.0
    %1262 = vmatpush2.msra.mxu0 0.0
    %1263 = vmatprep.subr.mxu0 0.0
    %1264 = vmatpush2.msra.mxu0 0.0
    %1265 = vmatprep.subr.mxu0 0.0
    %1266 = vmatpush2.msra.mxu0 0.0
    %1267 = vmatprep.subr.mxu0 0.0
    %1268 = vmatpush2.msra.mxu0 0.0
    %1269 = vmatprep.mubr.f32.mxu0 0.0
    %1270 = vmatmul.mubr.f32.gmra.mxu0 %v1203
    %v1271 = vpop.f32.mrf.mxu0
    %v1272 = vadd.f32 0.0, %v1271
    %v1273 = vpop.f32.mrf.mxu0
    %1274 = vdwg.mxu0
    %1275 = vrot.lane.b32.xlu0 %v161, 64
    %v1276 = vpop.permute.xlu0 %1275
    %v1279 = vsel %vm168, %v892, 0
    %1281 = vmatprep.subr.mxu0 0.0
    %1282 = vmatpush1.msra.mxu0 0.0
    %1283 = vmatprep.subr.mxu0 0.0
    %1284 = vmatpush1.msra.mxu0 0.0
    %1285 = vmatprep.subr.mxu0 0.0
    %1286 = vmatpush1.msra.mxu0 0.0
    %1287 = vmatprep.subr.mxu0 0.0
    %1288 = vmatpush1.msra.mxu0 0.0
    %1289 = vmatprep.subr.mxu0 0.0
    %1290 = vmatpush1.msra.mxu0 0.0
    %1291 = vmatprep.subr.mxu0 0.0
    %1292 = vmatpush1.msra.mxu0 0.0
    %1293 = vmatprep.subr.mxu0 0.0
    %1294 = vmatpush1.msra.mxu0 0.0
    %1295 = vmatprep.subr.mxu0 0.0
    %1296 = vmatpush1.msra.mxu0 0.0
    %1297 = vmatprep.subr.mxu0 0.0
    %1298 = vmatpush1.msra.mxu0 0.0
    %1299 = vmatprep.subr.mxu0 0.0
    %1300 = vmatpush1.msra.mxu0 0.0
    %1301 = vmatprep.subr.mxu0 0.0
    %1302 = vmatpush1.msra.mxu0 0.0
    %1303 = vmatprep.subr.mxu0 0.0
    %1304 = vmatpush1.msra.mxu0 0.0
    %1305 = vmatprep.subr.mxu0 0.0
    %1306 = vmatpush1.msra.mxu0 0.0
    %1307 = vmatprep.subr.mxu0 0.0
    %1308 = vmatpush1.msra.mxu0 0.0
    %1309 = vmatprep.subr.mxu0 0.0
    %1310 = vmatpush1.msra.mxu0 0.0
    %1311 = vmatprep.subr.mxu0 0.0
    %1312 = vmatpush1.msra.mxu0 %v1276
    %1313 = vmatprep.subr.mxu0 0.0
    %1314 = vmatpush2.msra.mxu0 0.0
    %1315 = vmatprep.subr.mxu0 0.0
    %1316 = vmatpush2.msra.mxu0 0.0
    %1317 = vmatprep.subr.mxu0 0.0
    %1318 = vmatpush2.msra.mxu0 0.0
    %1319 = vmatprep.subr.mxu0 0.0
    %1320 = vmatpush2.msra.mxu0 0.0
    %1321 = vmatprep.subr.mxu0 0.0
    %1322 = vmatpush2.msra.mxu0 0.0
    %1323 = vmatprep.subr.mxu0 0.0
    %1324 = vmatpush2.msra.mxu0 0.0
    %1325 = vmatprep.subr.mxu0 0.0
    %1326 = vmatpush2.msra.mxu0 0.0
    %1327 = vmatprep.subr.mxu0 0.0
    %1328 = vmatpush2.msra.mxu0 0.0
    %1329 = vmatprep.subr.mxu0 0.0
    %1330 = vmatpush2.msra.mxu0 0.0
    %1331 = vmatprep.subr.mxu0 0.0
    %1332 = vmatpush2.msra.mxu0 0.0
    %1333 = vmatprep.subr.mxu0 0.0
    %1334 = vmatpush2.msra.mxu0 0.0
    %1335 = vmatprep.subr.mxu0 0.0
    %1336 = vmatpush2.msra.mxu0 0.0
    %1337 = vmatprep.subr.mxu0 0.0
    %1338 = vmatpush2.msra.mxu0 0.0
    %1339 = vmatprep.subr.mxu0 0.0
    %1340 = vmatpush2.msra.mxu0 0.0
    %1341 = vmatprep.subr.mxu0 0.0
    %1342 = vmatpush2.msra.mxu0 0.0
    %1343 = vmatprep.subr.mxu0 0.0
    %1344 = vmatpush2.msra.mxu0 0.0
    %1345 = vmatprep.mubr.f32.mxu0 0.0
    %1346 = vmatmul.mubr.f32.gmra.mxu0 %v1279
    %v1347 = vpop.f32.mrf.mxu0
    %v1348 = vadd.f32 0.0, %v1347
    %v1349 = vpop.f32.mrf.mxu0
    %1350 = vdwg.mxu0
    %1351 = vrot.lane.b32.xlu0 %v163, 64
    %v1352 = vpop.permute.xlu0 %1351
    %v1355 = vsel %vm168, %v893, 0
    %1357 = vmatprep.subr.mxu0 0.0
    %1358 = vmatpush1.msra.mxu0 0.0
    %1359 = vmatprep.subr.mxu0 0.0
    %1360 = vmatpush1.msra.mxu0 0.0
    %1361 = vmatprep.subr.mxu0 0.0
    %1362 = vmatpush1.msra.mxu0 0.0
    %1363 = vmatprep.subr.mxu0 0.0
    %1364 = vmatpush1.msra.mxu0 0.0
    %1365 = vmatprep.subr.mxu0 0.0
    %1366 = vmatpush1.msra.mxu0 0.0
    %1367 = vmatprep.subr.mxu0 0.0
    %1368 = vmatpush1.msra.mxu0 0.0
    %1369 = vmatprep.subr.mxu0 0.0
    %1370 = vmatpush1.msra.mxu0 0.0
    %1371 = vmatprep.subr.mxu0 0.0
    %1372 = vmatpush1.msra.mxu0 0.0
    %1373 = vmatprep.subr.mxu0 0.0
    %1374 = vmatpush1.msra.mxu0 0.0
    %1375 = vmatprep.subr.mxu0 0.0
    %1376 = vmatpush1.msra.mxu0 0.0
    %1377 = vmatprep.subr.mxu0 0.0
    %1378 = vmatpush1.msra.mxu0 0.0
    %1379 = vmatprep.subr.mxu0 0.0
    %1380 = vmatpush1.msra.mxu0 0.0
    %1381 = vmatprep.subr.mxu0 0.0
    %1382 = vmatpush1.msra.mxu0 0.0
    %1383 = vmatprep.subr.mxu0 0.0
    %1384 = vmatpush1.msra.mxu0 0.0
    %1385 = vmatprep.subr.mxu0 0.0
    %1386 = vmatpush1.msra.mxu0 0.0
    %1387 = vmatprep.subr.mxu0 0.0
    %1388 = vmatpush1.msra.mxu0 %v1352
    %1389 = vmatprep.subr.mxu0 0.0
    %1390 = vmatpush2.msra.mxu0 0.0
    %1391 = vmatprep.subr.mxu0 0.0
    %1392 = vmatpush2.msra.mxu0 0.0
    %1393 = vmatprep.subr.mxu0 0.0
    %1394 = vmatpush2.msra.mxu0 0.0
    %1395 = vmatprep.subr.mxu0 0.0
    %1396 = vmatpush2.msra.mxu0 0.0
    %1397 = vmatprep.subr.mxu0 0.0
    %1398 = vmatpush2.msra.mxu0 0.0
    %1399 = vmatprep.subr.mxu0 0.0
    %1400 = vmatpush2.msra.mxu0 0.0
    %1401 = vmatprep.subr.mxu0 0.0
    %1402 = vmatpush2.msra.mxu0 0.0
    %1403 = vmatprep.subr.mxu0 0.0
    %1404 = vmatpush2.msra.mxu0 0.0
    %1405 = vmatprep.subr.mxu0 0.0
    %1406 = vmatpush2.msra.mxu0 0.0
    %1407 = vmatprep.subr.mxu0 0.0
    %1408 = vmatpush2.msra.mxu0 0.0
    %1409 = vmatprep.subr.mxu0 0.0
    %1410 = vmatpush2.msra.mxu0 0.0
    %1411 = vmatprep.subr.mxu0 0.0
    %1412 = vmatpush2.msra.mxu0 0.0
    %1413 = vmatprep.subr.mxu0 0.0
    %1414 = vmatpush2.msra.mxu0 0.0
    %1415 = vmatprep.subr.mxu0 0.0
    %1416 = vmatpush2.msra.mxu0 0.0
    %1417 = vmatprep.subr.mxu0 0.0
    %1418 = vmatpush2.msra.mxu0 0.0
    %1419 = vmatprep.subr.mxu0 0.0
    %1420 = vmatpush2.msra.mxu0 0.0
    %1421 = vmatprep.mubr.f32.mxu0 0.0
    %1422 = vmatmul.mubr.f32.gmra.mxu0 %v1355
    %v1423 = vpop.f32.mrf.mxu0
    %v1424 = vadd.f32 0.0, %v1423
    %v1425 = vpop.f32.mrf.mxu0
    %1426 = vdwg.mxu0
    %1427 = vrot.lane.b32.xlu0 %v165, 64
    %v1428 = vpop.permute.xlu0 %1427
    %v1431 = vsel %vm168, %v894, 0
    %1433 = vmatprep.subr.mxu0 0.0
    %1434 = vmatpush1.msra.mxu0 0.0
    %1435 = vmatprep.subr.mxu0 0.0
    %1436 = vmatpush1.msra.mxu0 0.0
    %1437 = vmatprep.subr.mxu0 0.0
    %1438 = vmatpush1.msra.mxu0 0.0
    %1439 = vmatprep.subr.mxu0 0.0
    %1440 = vmatpush1.msra.mxu0 0.0
    %1441 = vmatprep.subr.mxu0 0.0
    %1442 = vmatpush1.msra.mxu0 0.0
    %1443 = vmatprep.subr.mxu0 0.0
    %1444 = vmatpush1.msra.mxu0 0.0
    %1445 = vmatprep.subr.mxu0 0.0
    %1446 = vmatpush1.msra.mxu0 0.0
    %1447 = vmatprep.subr.mxu0 0.0
    %1448 = vmatpush1.msra.mxu0 0.0
    %1449 = vmatprep.subr.mxu0 0.0
    %1450 = vmatpush1.msra.mxu0 0.0
    %1451 = vmatprep.subr.mxu0 0.0
    %1452 = vmatpush1.msra.mxu0 0.0
    %1453 = vmatprep.subr.mxu0 0.0
    %1454 = vmatpush1.msra.mxu0 0.0
    %1455 = vmatprep.subr.mxu0 0.0
    %1456 = vmatpush1.msra.mxu0 0.0
    %1457 = vmatprep.subr.mxu0 0.0
    %1458 = vmatpush1.msra.mxu0 0.0
    %1459 = vmatprep.subr.mxu0 0.0
    %1460 = vmatpush1.msra.mxu0 0.0
    %1461 = vmatprep.subr.mxu0 0.0
    %1462 = vmatpush1.msra.mxu0 0.0
    %1463 = vmatprep.subr.mxu0 0.0
    %1464 = vmatpush1.msra.mxu0 %v1428
    %1465 = vmatprep.subr.mxu0 0.0
    %1466 = vmatpush2.msra.mxu0 0.0
    %1467 = vmatprep.subr.mxu0 0.0
    %1468 = vmatpush2.msra.mxu0 0.0
    %1469 = vmatprep.subr.mxu0 0.0
    %1470 = vmatpush2.msra.mxu0 0.0
    %1471 = vmatprep.subr.mxu0 0.0
    %1472 = vmatpush2.msra.mxu0 0.0
    %1473 = vmatprep.subr.mxu0 0.0
    %1474 = vmatpush2.msra.mxu0 0.0
    %1475 = vmatprep.subr.mxu0 0.0
    %1476 = vmatpush2.msra.mxu0 0.0
    %1477 = vmatprep.subr.mxu0 0.0
    %1478 = vmatpush2.msra.mxu0 0.0
    %1479 = vmatprep.subr.mxu0 0.0
    %1480 = vmatpush2.msra.mxu0 0.0
    %1481 = vmatprep.subr.mxu0 0.0
    %1482 = vmatpush2.msra.mxu0 0.0
    %1483 = vmatprep.subr.mxu0 0.0
    %1484 = vmatpush2.msra.mxu0 0.0
    %1485 = vmatprep.subr.mxu0 0.0
    %1486 = vmatpush2.msra.mxu0 0.0
    %1487 = vmatprep.subr.mxu0 0.0
    %1488 = vmatpush2.msra.mxu0 0.0
    %1489 = vmatprep.subr.mxu0 0.0
    %1490 = vmatpush2.msra.mxu0 0.0
    %1491 = vmatprep.subr.mxu0 0.0
    %1492 = vmatpush2.msra.mxu0 0.0
    %1493 = vmatprep.subr.mxu0 0.0
    %1494 = vmatpush2.msra.mxu0 0.0
    %1495 = vmatprep.subr.mxu0 0.0
    %1496 = vmatpush2.msra.mxu0 0.0
    %1497 = vmatprep.mubr.f32.mxu0 0.0
    %1498 = vmatmul.mubr.f32.gmra.mxu0 %v1431
    %v1499 = vpop.f32.mrf.mxu0
    %v1500 = vadd.f32 0.0, %v1499
    %v1501 = vpop.f32.mrf.mxu0
    %1502 = vdwg.mxu0
    %1505 = vrot.lane.b32.xlu0 %v1120, 8
    %v1506 = vpop.permute.xlu0 %1505
    %1507 = vrot.lane.b32.xlu0 %v1196, 8
    %v1508 = vpop.permute.xlu0 %1507
    %1513 = vrot.lane.b32.xlu0 %v1272, 16
    %v1514 = vpop.permute.xlu0 %1513
    %1515 = vrot.lane.b32.xlu0 %v1348, 16
    %v1516 = vpop.permute.xlu0 %1515
    %1521 = vrot.lane.b32.xlu0 %v1424, 24
    %v1522 = vpop.permute.xlu0 %1521
    %1523 = vrot.lane.b32.xlu0 %v1500, 24
    %v1524 = vpop.permute.xlu0 %1523
    %v1527 = vsel %vm168, %v968, %v1506
    %v1528 = vsel %vm168, %v1044, %v1508
    %vm1529 = vcmask 130048
    %v1530 = vsel %vm1529, %v1527, %v1514
    %v1531 = vsel %vm1529, %v1528, %v1516
    %vm1532 = vcmask 195584
    %v1533 = vsel %vm1532, %v1530, %v1522
    %v1534 = vsel %vm1532, %v1531, %v1524
    %1535 = vrot.lane.b32.xlu0 %v889, 8
    %v1536 = vpop.permute.xlu0 %1535
    %1537 = vrot.lane.b32.xlu0 %v890, 8
    %v1538 = vpop.permute.xlu0 %1537
    %1541 = vrot.lane.b32.xlu0 %v891, 16
    %v1542 = vpop.permute.xlu0 %1541
    %1543 = vrot.lane.b32.xlu0 %v892, 16
    %v1544 = vpop.permute.xlu0 %1543
    %1547 = vrot.lane.b32.xlu0 %v893, 24
    %v1548 = vpop.permute.xlu0 %1547
    %1549 = vrot.lane.b32.xlu0 %v894, 24
    %v1550 = vpop.permute.xlu0 %1549
    %v1553 = vsel %vm168, %v887, %v1536
    %v1554 = vsel %vm168, %v888, %v1538
    %v1555 = vsel %vm1529, %v1553, %v1542
    %v1556 = vsel %vm1529, %v1554, %v1544
    %v1557 = vsel %vm1532, %v1555, %v1548
    %v1558 = vsel %vm1532, %v1556, %v1550
    %v1559 = vpack.c.bf16 %v1534, %v1533
    %v1560 = vld [vmem:[%s4] sm:$0xf]
    %v1561 = vld [vmem:[%s4 + $0x4] sm:$0xf]
    %v1562 = vld [vmem:[%s4 + $0x8] sm:$0xf]
    %v1563 = vld [vmem:[%s4 + $0xc] sm:$0xf]
    %v1564 = vld [vmem:[%s5] sm:$0x1]
    %v1566 = vlaneseq
    %v1567 = vshrl.u32 %v1566, 7
    %v1568 = vsub.s32 0, %v1567
    %v1569 = vrot.slane %v1564, %v1568
    %v1575 = vunpack.c.l.b16 %v1560
    %v1576 = vunpack.c.l.b16 %v1561
    %v1577 = vunpack.c.l.b16 %v1562
    %v1578 = vunpack.c.l.b16 %v1563
    %v1579 = vpack.c.b16 %v1576, %v1575
    %v1580 = vpack.c.b16 %v1578, %v1577
    %v1584 = vsel %vm47, %v1559, 0
    %1586 = vmatprep.subr.bf16.mxu0 0
    %1587 = vmatpush1.bf16.msra.mxu0 0
    %1588 = vmatprep.subr.bf16.mxu0 0
    %1589 = vmatpush1.bf16.msra.mxu0 0
    %1590 = vmatprep.subr.bf16.mxu0 0
    %1591 = vmatpush1.bf16.msra.mxu0 0
    %1592 = vmatprep.subr.bf16.mxu0 0
    %1593 = vmatpush1.bf16.msra.mxu0 0
    %1594 = vmatprep.subr.bf16.mxu0 0
    %1595 = vmatpush1.bf16.msra.mxu0 0
    %1596 = vmatprep.subr.bf16.mxu0 0
    %1597 = vmatpush1.bf16.msra.mxu0 0
    %1598 = vmatprep.subr.bf16.mxu0 0
    %1599 = vmatpush1.bf16.msra.mxu0 %v1580
    %1600 = vmatprep.subr.bf16.mxu0 0
    %1601 = vmatpush1.bf16.msra.mxu0 %v1579
    %1602 = vmatprep.subr.bf16.mxu0 0
    %1603 = vmatpush2.bf16.msra.mxu0 0
    %1604 = vmatprep.subr.bf16.mxu0 0
    %1605 = vmatpush2.bf16.msra.mxu0 0
    %1606 = vmatprep.subr.bf16.mxu0 0
    %1607 = vmatpush2.bf16.msra.mxu0 0
    %1608 = vmatprep.subr.bf16.mxu0 0
    %1609 = vmatpush2.bf16.msra.mxu0 0
    %1610 = vmatprep.subr.bf16.mxu0 0
    %1611 = vmatpush2.bf16.msra.mxu0 0
    %1612 = vmatprep.subr.bf16.mxu0 0
    %1613 = vmatpush2.bf16.msra.mxu0 0
    %1614 = vmatprep.subr.bf16.mxu0 0
    %1615 = vmatpush2.bf16.msra.mxu0 0
    %1616 = vmatprep.subr.bf16.mxu0 0
    %1617 = vmatpush2.bf16.msra.mxu0 0
    %1618 = vmatprep.mubr.bf16.mxu0 0
    %1619 = vmatmul.mubr.bf16.gmra.mxu0 %v1584
    %v1620 = vpop.f32.mrf.mxu0
    %v1621 = vadd.f32 %v1569, %v1620
    %v1622 = vpop.f32.mrf.mxu0
    %v1623 = vpop.f32.mrf.mxu0
    %v1624 = vadd.f32 %v1569, %v1623
    %v1625 = vpop.f32.mrf.mxu0
    %1626 = vdwg.mxu0
    %v1627 = vadd.f32 %v43, %v1621
    %v1628 = vadd.f32 %v44, %v1624
    %v1629 = vld [vmem:[%s6] sm:$0x1]
    %v1630 = vld [vmem:[%s7] sm:$0x1]
    %v1631 = vsel %vm47, %v1627, 0.0
    %1632 = vadd.xlane.f32.xlu0 %v1631
    %v1633 = vpop.xlane.xlu0 %1632
    %v1634 = vsel %vm47, %v1628, 0.0
    %1635 = vadd.xlane.f32.xlu0 %v1634
    %v1636 = vpop.xlane.xlu0 %1635
    %v1637 = vmul.f32 %v1633, %v54
    %v1638 = vmul.f32 %v1636, %v54
    %v1639 = vsub.f32 %v1627, %v1637
    %v1640 = vsub.f32 %v1628, %v1638
    %v1641 = vmul.f32 %v1639, %v1639
    %v1642 = vmul.f32 %v1640, %v1640
    %v1643 = vsel %vm47, %v1641, 0.0
    %1644 = vadd.xlane.f32.xlu0 %v1643
    %v1645 = vpop.xlane.xlu0 %1644
    %v1646 = vsel %vm47, %v1642, 0.0
    %1647 = vadd.xlane.f32.xlu0 %v1646
    %v1648 = vpop.xlane.xlu0 %1647
    %v1649 = vmul.f32 %v1645, %v54
    %v1650 = vmul.f32 %v1648, %v54
    %v1651 = vadd.f32 %v1649, 1e-06
    %v1652 = vadd.f32 %v1650, 1e-06
    %v1653 = vrsqrt.pop %v1651
    %v1654 = vrsqrt.pop %v1652
    %v1655 = vmul.f32 %v1639, %v1653
    %v1656 = vmul.f32 %v1640, %v1654
    %v1658 = vlaneseq
    %v1659 = vshrl.u32 %v1658, 7
    %v1660 = vsub.s32 0, %v1659
    %v1661 = vrot.slane %v1629, %v1660
    %v1663 = vmul.f32 %v1655, %v1661
    %v1664 = vmul.f32 %v1656, %v1661
    %v1666 = vlaneseq
    %v1667 = vshrl.u32 %v1666, 7
    %v1668 = vsub.s32 0, %v1667
    %v1669 = vrot.slane %v1630, %v1668
    %v1671 = vadd.f32 %v1663, %v1669
    %v1672 = vadd.f32 %v1664, %v1669
    %v1673 = vpack.c.bf16 %v1672, %v1671
    %v1674 = vld [vmem:[%s8] sm:$0xf]
    %v1675 = vld [vmem:[%s8 + $0x4] sm:$0xf]
    %v1676 = vld [vmem:[%s8 + $0x8] sm:$0xf]
    %v1677 = vld [vmem:[%s8 + $0xc] sm:$0xf]
    %v1678 = vld [vmem:[%s9] sm:$0x1]
    %v1680 = vlaneseq
    %v1681 = vshrl.u32 %v1680, 7
    %v1682 = vsub.s32 0, %v1681
    %v1683 = vrot.slane %v1678, %v1682
    %v1689 = vunpack.c.l.b16 %v1674
    %v1690 = vunpack.c.l.b16 %v1675
    %v1691 = vunpack.c.l.b16 %v1676
    %v1692 = vunpack.c.l.b16 %v1677
    %v1693 = vpack.c.b16 %v1690, %v1689
    %v1694 = vpack.c.b16 %v1692, %v1691
    %v1698 = vsel %vm47, %v1673, 0
    %1700 = vmatprep.subr.bf16.mxu0 0
    %1701 = vmatpush1.bf16.msra.mxu0 0
    %1702 = vmatprep.subr.bf16.mxu0 0
    %1703 = vmatpush1.bf16.msra.mxu0 0
    %1704 = vmatprep.subr.bf16.mxu0 0
    %1705 = vmatpush1.bf16.msra.mxu0 0
    %1706 = vmatprep.subr.bf16.mxu0 0
    %1707 = vmatpush1.bf16.msra.mxu0 0
    %1708 = vmatprep.subr.bf16.mxu0 0
    %1709 = vmatpush1.bf16.msra.mxu0 0
    %1710 = vmatprep.subr.bf16.mxu0 0
    %1711 = vmatpush1.bf16.msra.mxu0 0
    %1712 = vmatprep.subr.bf16.mxu0 0
    %1713 = vmatpush1.bf16.msra.mxu0 %v1694
    %1714 = vmatprep.subr.bf16.mxu0 0
    %1715 = vmatpush1.bf16.msra.mxu0 %v1693
    %1716 = vmatprep.subr.bf16.mxu0 0
    %1717 = vmatpush2.bf16.msra.mxu0 0
    %1718 = vmatprep.subr.bf16.mxu0 0
    %1719 = vmatpush2.bf16.msra.mxu0 0
    %1720 = vmatprep.subr.bf16.mxu0 0
    %1721 = vmatpush2.bf16.msra.mxu0 0
    %1722 = vmatprep.subr.bf16.mxu0 0
    %1723 = vmatpush2.bf16.msra.mxu0 0
    %1724 = vmatprep.subr.bf16.mxu0 0
    %1725 = vmatpush2.bf16.msra.mxu0 0
    %1726 = vmatprep.subr.bf16.mxu0 0
    %1727 = vmatpush2.bf16.msra.mxu0 0
    %1728 = vmatprep.subr.bf16.mxu0 0
    %1729 = vmatpush2.bf16.msra.mxu0 0
    %1730 = vmatprep.subr.bf16.mxu0 0
    %1731 = vmatpush2.bf16.msra.mxu0 0
    %1732 = vmatprep.mubr.bf16.mxu0 0
    %1733 = vmatmul.mubr.bf16.gmra.mxu0 %v1698
    %v1734 = vpop.f32.mrf.mxu0
    %v1735 = vadd.f32 %v1683, %v1734
    %v1736 = vpop.f32.mrf.mxu0
    %v1737 = vpop.f32.mrf.mxu0
    %v1738 = vadd.f32 %v1683, %v1737
    %v1739 = vpop.f32.mrf.mxu0
    %1740 = vdwg.mxu0
    %v1741 = vmul.f32 %v1735, 0.5
    %v1742 = vmul.f32 %v1738, 0.5
    %v1743 = vmul.f32 %v1735, 0.70710677
    %v1744 = vmul.f32 %v1738, 0.70710677
    %vm1745 = vcmp.ge.f32.partialorder %v1743, 0.0
    %vm1746 = vcmp.ge.f32.partialorder %v1744, 0.0
    %v1747 = vsel %vm1745, 1.0, -1.0
    %v1748 = vsel %vm1746, 1.0, -1.0
    %v1749 = vand.u32 2147483647, %v1743
    %v1750 = vand.u32 2147483647, %v1744
    %v1751 = vmul.f32 %v1749, 0.3275911
    %v1752 = vmul.f32 %v1750, 0.3275911
    %v1753 = vadd.f32 %v1751, 1.0
    %v1754 = vadd.f32 %v1752, 1.0
    %v1755 = vrcp.pop %v1753
    %v1756 = vrcp.pop %v1754
    %v1757 = vmul.f32 %v1753, %v1755
    %v1758 = vmul.f32 %v1754, %v1756
    %v1759 = vsub.f32 2.0, %v1757
    %v1760 = vsub.f32 2.0, %v1758
    %v1761 = vmul.f32 %v1755, %v1759
    %v1762 = vmul.f32 %v1756, %v1760
    %v1763 = vmul.f32 %v1761, 1.0614054
    %v1764 = vmul.f32 %v1762, 1.0614054
    %v1765 = vadd.f32 %v1763, -1.4531521
    %v1766 = vadd.f32 %v1764, -1.4531521
    %v1767 = vmul.f32 %v1765, %v1761
    %v1768 = vmul.f32 %v1766, %v1762
    %v1769 = vadd.f32 %v1767, 1.4214138
    %v1770 = vadd.f32 %v1768, 1.4214138
    %v1771 = vmul.f32 %v1769, %v1761
    %v1772 = vmul.f32 %v1770, %v1762
    %v1773 = vadd.f32 %v1771, -0.28449672
    %v1774 = vadd.f32 %v1772, -0.28449672
    %v1775 = vmul.f32 %v1773, %v1761
    %v1776 = vmul.f32 %v1774, %v1762
    %v1777 = vadd.f32 %v1775, 0.2548296
    %v1778 = vadd.f32 %v1776, 0.2548296
    %v1779 = vmul.f32 %v1777, %v1761
    %v1780 = vmul.f32 %v1778, %v1762
    %v1781 = vsub.f32 0.0, %v1749
    %v1782 = vsub.f32 0.0, %v1750
    %v1783 = vmul.f32 %v1781, %v1749
    %v1784 = vmul.f32 %v1782, %v1750
    %v1785 = vmul.f32 %v1783, 1.442695
    %v1786 = vpow.pop %v1785
    %v1787 = vmul.f32 %v1784, 1.442695
    %v1788 = vpow.pop %v1787
    %v1789 = vmul.f32 %v1779, %v1786
    %v1790 = vmul.f32 %v1780, %v1788
    %v1791 = vsub.f32 1.0, %v1789
    %v1792 = vsub.f32 1.0, %v1790
    %v1793 = vmul.f32 %v1747, %v1791
    %v1794 = vmul.f32 %v1748, %v1792
    %v1795 = vadd.f32 %v1793, 1.0
    %v1796 = vadd.f32 %v1794, 1.0
    %v1797 = vmul.f32 %v1741, %v1795
    %v1798 = vmul.f32 %v1742, %v1796
    %v1799 = vpack.c.bf16 %v1798, %v1797
    %v1800 = vld [vmem:[%s10] sm:$0xf]
    %v1801 = vld [vmem:[%s10 + $0x4] sm:$0xf]
    %v1802 = vld [vmem:[%s10 + $0x8] sm:$0xf]
    %v1803 = vld [vmem:[%s10 + $0xc] sm:$0xf]
    %v1804 = vld [vmem:[%s10 + $0x10] sm:$0xf]
    %v1805 = vld [vmem:[%s10 + $0x14] sm:$0xf]
    %v1806 = vld [vmem:[%s10 + $0x18] sm:$0xf]
    %v1807 = vld [vmem:[%s10 + $0x1c] sm:$0xf]
    %v1808 = vld [vmem:[%s10 + $0x20] sm:$0xf]
    %v1809 = vld [vmem:[%s10 + $0x24] sm:$0xf]
    %v1810 = vld [vmem:[%s10 + $0x28] sm:$0xf]
    %v1811 = vld [vmem:[%s10 + $0x2c] sm:$0xf]
    %v1812 = vld [vmem:[%s10 + $0x30] sm:$0xf]
    %v1813 = vld [vmem:[%s10 + $0x34] sm:$0xf]
    %v1814 = vld [vmem:[%s10 + $0x38] sm:$0xf]
    %v1815 = vld [vmem:[%s10 + $0x3c] sm:$0xf]
    %v1816 = vld [vmem:[%s11] sm:$0x1]
    %v1818 = vlaneseq
    %v1819 = vshrl.u32 %v1818, 7
    %v1820 = vsub.s32 0, %v1819
    %v1821 = vrot.slane %v1816, %v1820
    %v1839 = vunpack.c.l.b16 %v1800
    %v1840 = vunpack.c.l.b16 %v1801
    %v1841 = vunpack.c.l.b16 %v1802
    %v1842 = vunpack.c.l.b16 %v1803
    %v1843 = vunpack.c.l.b16 %v1804
    %v1844 = vunpack.c.l.b16 %v1805
    %v1845 = vunpack.c.l.b16 %v1806
    %v1846 = vunpack.c.l.b16 %v1807
    %v1847 = vunpack.c.l.b16 %v1808
    %v1848 = vunpack.c.l.b16 %v1809
    %v1849 = vunpack.c.l.b16 %v1810
    %v1850 = vunpack.c.l.b16 %v1811
    %v1851 = vunpack.c.l.b16 %v1812
    %v1852 = vunpack.c.l.b16 %v1813
    %v1853 = vunpack.c.l.b16 %v1814
    %v1854 = vunpack.c.l.b16 %v1815
    %v1855 = vpack.c.b16 %v1840, %v1839
    %v1856 = vpack.c.b16 %v1842, %v1841
    %v1857 = vpack.c.b16 %v1844, %v1843
    %v1858 = vpack.c.b16 %v1846, %v1845
    %v1859 = vpack.c.b16 %v1848, %v1847
    %v1860 = vpack.c.b16 %v1850, %v1849
    %v1861 = vpack.c.b16 %v1852, %v1851
    %v1862 = vpack.c.b16 %v1854, %v1853
    %1871 = vmatprep.subr.bf16.mxu0 0
    %1872 = vmatpush1.bf16.msra.mxu0 %v1862
    %1873 = vmatprep.subr.bf16.mxu0 0
    %1874 = vmatpush1.bf16.msra.mxu0 %v1861
    %1875 = vmatprep.subr.bf16.mxu0 0
    %1876 = vmatpush1.bf16.msra.mxu0 %v1860
    %1877 = vmatprep.subr.bf16.mxu0 0
    %1878 = vmatpush1.bf16.msra.mxu0 %v1859
    %1879 = vmatprep.subr.bf16.mxu0 0
    %1880 = vmatpush1.bf16.msra.mxu0 %v1858
    %1881 = vmatprep.subr.bf16.mxu0 0
    %1882 = vmatpush1.bf16.msra.mxu0 %v1857
    %1883 = vmatprep.subr.bf16.mxu0 0
    %1884 = vmatpush1.bf16.msra.mxu0 %v1856
    %1885 = vmatprep.subr.bf16.mxu0 0
    %1886 = vmatpush1.bf16.msra.mxu0 %v1855
    %1887 = vmatprep.subr.bf16.mxu0 0
    %1888 = vmatpush2.bf16.msra.mxu0 0
    %1889 = vmatprep.subr.bf16.mxu0 0
    %1890 = vmatpush2.bf16.msra.mxu0 0
    %1891 = vmatprep.subr.bf16.mxu0 0
    %1892 = vmatpush2.bf16.msra.mxu0 0
    %1893 = vmatprep.subr.bf16.mxu0 0
    %1894 = vmatpush2.bf16.msra.mxu0 0
    %1895 = vmatprep.subr.bf16.mxu0 0
    %1896 = vmatpush2.bf16.msra.mxu0 0
    %1897 = vmatprep.subr.bf16.mxu0 0
    %1898 = vmatpush2.bf16.msra.mxu0 0
    %1899 = vmatprep.subr.bf16.mxu0 0
    %1900 = vmatpush2.bf16.msra.mxu0 0
    %1901 = vmatprep.subr.bf16.mxu0 0
    %1902 = vmatpush2.bf16.msra.mxu0 0
    %1903 = vmatprep.mubr.bf16.mxu0 0
    %1904 = vmatmul.mubr.bf16.gmra.mxu0 %v1799
    %v1905 = vpop.f32.mrf.mxu0
    %v1906 = vadd.f32 %v1821, %v1905
    %v1907 = vpop.f32.mrf.mxu0
    %v1908 = vpop.f32.mrf.mxu0
    %v1909 = vadd.f32 %v1821, %v1908
    %v1910 = vpop.f32.mrf.mxu0
    %1911 = vdwg.mxu0
    %v1912 = vadd.f32 %v1627, %v1906
    %v1913 = vadd.f32 %v1628, %v1909
    %1916 = vrot.lane.b32.xlu0 %v1557, 32
    %v1917 = vpop.permute.xlu0 %1916
    %1918 = vrot.lane.b32.xlu0 %v1558, 32
    %v1919 = vpop.permute.xlu0 %1918
    %v1922 = vsel %vm47, %v1912, %v1917
    %v1923 = vsel %vm47, %v1913, %v1919
    %vm1924 = vcmask 523264
    %1925 = vst.msk [vmem:[#allocation2] sm:$0xff] %vm1924, %v1922
    %1926 = vst.msk [vmem:[#allocation2 + $0x8] sm:$0xff] %vm1924, %v1923
    // Predicated region
    $region50: #{tpu_custom_call.1} parent=1 // pred_check
      _
    $region51: #{tpu_custom_call.1} parent=1 // pred_check_branch
      %1928 = sbr.rel (0) target = $region53
    $region52: #{tpu_custom_call.1} parent=1 // pred_region
      %s1930 = ssub.s32 256, 256
      %1931 = vsyncadd [#allocation3], %s1930
      %s1932 = sshll.u32 [#allocation2], 4
      %s1933 = int_to_ptr.vmem [resolvable:$true] %s1932
      %1938 = dma.vmem_to_hbm [thread:$0]  %s1933, 256, %s12, [#allocation3], 128, 128, 8
    $region53: #{tpu_custom_call.1} parent=1 // pred_fallthru
      _
    // Predicated region
    $region54: #{tpu_custom_call.1} parent=1 // pred_check
      _
    $region55: #{tpu_custom_call.1} parent=1 // pred_check_branch
      %1940 = sbr.rel (0) target = $region57
    $region56: #{tpu_custom_call.1} parent=1 // pred_region
      %1941 = dma.done [#allocation3], 256
    $region57: #{tpu_custom_call.1} parent=1 // pred_fallthru
      _
    %1942 = vsyncpa [#allocation3], 1

</llo_original>
